<compile_context>
chip_gen: v6e
topology: v6e:2x2x1
jax: 0.10.0
libtpu: 0.0.40
codegen_flags: <defaults>
</compile_context>

<pallas_src>
import functools

import jax
import jax.numpy as jnp
from jax.experimental import pallas as pl
from jax.experimental.pallas import tpu as pltpu

LEAK = 0.05
EPS = 1e-5
LANE = 128
SUBLANE = 8
VMEM_LIMIT_BYTES = 48 * 1024 * 1024  # above the 32 MiB scoped default, below v7x 64 MiB


def _round_up(x, m):
    return (x + m - 1) // m * m


def _leaky(x):
    return jnp.where(x > 0, x, LEAK * x)


# ---------------------------------------------------------------------------
# Pallas kernels
# ---------------------------------------------------------------------------
def _stage1_kernel(p_ref, w_ref, shift_ref, o_ref):
    """One row tile: out = LeakyReLU(patches @ W1' + shift1')  (bias+BN folded)."""
    acc = jnp.dot(p_ref[...], w_ref[...], preferred_element_type=jnp.float32)
    o_ref[...] = _leaky(acc + shift_ref[...]).astype(o_ref.dtype)


def _stage2_kernel(x1_ref, w2_ref, t2_ref, xd_ref, wd_ref, td_ref, o_ref, *,
                   out_rows, wp):
    """One image: 3x3 conv as 9 in-kernel row-slab dots + downsample + residual + relu."""
    cpad = o_ref.shape[-1]
    acc = jnp.zeros((out_rows, cpad), jnp.float32)
    for t in range(9):                      # static unroll, 9 MXU dots
        dy, dx = divmod(t, 3)
        off = dy * wp + dx                  # static element offset into the flat slab
        lhs = x1_ref[0, off:off + out_rows, :].astype(jnp.bfloat16)
        acc = acc + jnp.dot(lhs, w2_ref[t], preferred_element_type=jnp.float32)
    acc = acc + t2_ref[...]                                       # folded bias + BN2
    ident = jnp.dot(xd_ref[0], wd_ref[...], preferred_element_type=jnp.float32)
    acc = acc + ident + td_ref[...]                               # folded BNd
    o_ref[0] = _leaky(acc).astype(o_ref.dtype)


# ---------------------------------------------------------------------------
# pallas_call wrappers
# ---------------------------------------------------------------------------
def _stage1_call(patches, w_eff, shift, tm):
    m, k = patches.shape
    cpad = w_eff.shape[1]
    return pl.pallas_call(
        _stage1_kernel,
        out_shape=jax.ShapeDtypeStruct((m, cpad), jnp.float32),
        grid_spec=pltpu.PrefetchScalarGridSpec(
            num_scalar_prefetch=0,
            grid=(m // tm,),
            in_specs=[
                pl.BlockSpec((tm, k), lambda i: (i, 0)),        # streamed row tiles
                pl.BlockSpec((k, cpad), lambda i: (0, 0)),      # resident weights
                pl.BlockSpec((1, cpad), lambda i: (0, 0)),      # resident shift
            ],
            out_specs=pl.BlockSpec((tm, cpad), lambda i: (i, 0)),
        ),
        compiler_params=pltpu.CompilerParams(
            dimension_semantics=("parallel",),
            vmem_limit_bytes=VMEM_LIMIT_BYTES,
        ),
    )(patches, w_eff, shift)


def _stage2_call(x1flat, w2p, s2p, xdflat, wdp, sdp, ho, wo):
    n, flat_rows, cpad = x1flat.shape
    wp = wo + 2
    out_rows = ho * wp
    cinp = wdp.shape[0]
    kernel = functools.partial(_stage2_kernel, out_rows=out_rows, wp=wp)
    return pl.pallas_call(
        kernel,
        out_shape=jax.ShapeDtypeStruct((n, out_rows, cpad), jnp.float32),
        grid_spec=pltpu.PrefetchScalarGridSpec(
            num_scalar_prefetch=0,
            grid=(n,),
            in_specs=[
                pl.BlockSpec((1, flat_rows, cpad), lambda i: (i, 0, 0)),  # padded act.
                pl.BlockSpec(w2p.shape, lambda i: (0, 0, 0)),             # 9 taps (resident)
                pl.BlockSpec((1, cpad), lambda i: (0, 0)),
                pl.BlockSpec((1, out_rows, cinp), lambda i: (i, 0, 0)),   # downsample input
                pl.BlockSpec((cinp, cpad), lambda i: (0, 0)),
                pl.BlockSpec((1, cpad), lambda i: (0, 0)),
            ],
            out_specs=pl.BlockSpec((1, out_rows, cpad), lambda i: (i, 0, 0)),
        ),
        compiler_params=pltpu.CompilerParams(
            dimension_semantics=("parallel",),
            vmem_limit_bytes=VMEM_LIMIT_BYTES,
        ),
    )(x1flat, w2p, s2p, xdflat, wdp, sdp)


# ---------------------------------------------------------------------------
# Plain-JAX glue: patch extraction (conv1 only), weight/BN folding, padding
# ---------------------------------------------------------------------------
def _extract_patches_3x3(x_nhwc, stride):
    """x: (N,H,W,C) -> patches (N*Ho*Wo, 9*C), channel order (kh, kw, cin)."""
    N, H, W, C = x_nhwc.shape
    Ho = (H + 2 - 3) // stride + 1
    Wo = (W + 2 - 3) // stride + 1
    xp = jnp.pad(x_nhwc, ((0, 0), (1, 1), (1, 1), (0, 0)))
    cols = []
    for dy in range(3):
        for dx in range(3):
            cols.append(xp[:, dy:dy + stride * (Ho - 1) + 1:stride,
                              dx:dx + stride * (Wo - 1) + 1:stride, :])
    patches = jnp.concatenate(cols, axis=-1)
    return patches.reshape(N * Ho * Wo, 9 * C), (N, Ho, Wo)


def _fold_bn_into_weight(w_mat, bias, gamma, beta, mean, var):
    """y = BN(x @ W + b) == x @ (W*scale) + (scale*b + beta - scale*mean)."""
    scale = gamma / jnp.sqrt(var + EPS)
    shift = beta - mean * scale
    if bias is not None:
        shift = shift + scale * bias
    return w_mat * scale[None, :], shift


def _pad2(a, rows, cols):
    return jnp.pad(a, ((0, rows - a.shape[0]), (0, cols - a.shape[1])))


def basic_block_downsample_forward(x_nchw, params, *, tm=512):
    x = jnp.transpose(x_nchw, (0, 2, 3, 1)).astype(jnp.float32)   # NCHW -> NHWC
    N, H, W, Cin = x.shape
    Cout = params["w1"].shape[0]
    Ho, Wo = (H - 1) // 2 + 1, (W - 1) // 2 + 1
    Cpad = _round_up(Cout, LANE)     # lane-dense output channels
    Cinp = _round_up(Cin, LANE)

    # --------- stage 1: conv3x3 stride 2 + BN1 + LeakyReLU (row-tiled matmul) ---------
    p1, _ = _extract_patches_3x3(x, stride=2)                      # (M1, 9*Cin)
    M1, K1 = p1.shape
    K1p = _round_up(K1, LANE)
    tm_eff = min(_round_up(tm, SUBLANE), _round_up(M1, SUBLANE))   # TM multiple of 8
    M1p = _round_up(M1, tm_eff)

    w1_mat = jnp.transpose(params["w1"], (2, 3, 1, 0)).reshape(K1, Cout)
    w1_eff, shift1 = _fold_bn_into_weight(
        w1_mat, params["b1"], params["bn1_g"], params["bn1_b"],
        params["bn1_m"], params["bn1_v"])
    p1p = _pad2(p1, M1p, K1p).astype(jnp.bfloat16)
    w1p = _pad2(w1_eff, K1p, Cpad).astype(jnp.bfloat16)
    s1p = _pad2(shift1[None, :], 1, Cpad)

    out1 = _stage1_call(p1p, w1p, s1p, tm_eff)                     # (M1p, Cpad) f32
    out1 = out1[:M1].reshape(N, Ho, Wo, Cpad)

    # --------- stage 2: conv3x3 stride 1 + BN2, fused downsample + residual + relu ----
    Hp, Wp = Ho + 2, Wo + 2
    out_rows = Ho * Wp
    flat_rows = _round_up(Hp * Wp + 2, SUBLANE)   # +2 so the last tap slab stays in-bounds
    x1flat = jnp.pad(out1, ((0, 0), (1, 1), (1, 1), (0, 0))).reshape(N, Hp * Wp, Cpad)
    x1flat = jnp.pad(x1flat, ((0, 0), (0, flat_rows - Hp * Wp), (0, 0)))

    w2_mat = jnp.transpose(params["w2"], (2, 3, 1, 0)).reshape(9 * Cout, Cout)
    w2_eff, shift2 = _fold_bn_into_weight(
        w2_mat, params["b2"], params["bn2_g"], params["bn2_b"],
        params["bn2_m"], params["bn2_v"])
    w2p = jnp.pad(w2_eff.reshape(9, Cout, Cout),
                  ((0, 0), (0, Cpad - Cout), (0, Cpad - Cout))).astype(jnp.bfloat16)
    s2p = _pad2(shift2[None, :], 1, Cpad)

    wd_mat = params["wd"].reshape(Cout, Cin).T                     # (Cin, Cout)
    wd_eff, shiftd = _fold_bn_into_weight(
        wd_mat, None, params["bnd_g"], params["bnd_b"],
        params["bnd_m"], params["bnd_v"])
    wdp = _pad2(wd_eff, Cinp, Cpad).astype(jnp.bfloat16)
    sdp = _pad2(shiftd[None, :], 1, Cpad)

    xd = x[:, ::2, ::2, :]                                         # (N, Ho, Wo, Cin)
    xd = jnp.pad(xd, ((0, 0), (0, 0), (0, Wp - Wo), (0, Cinp - Cin)))
    xdflat = xd.reshape(N, out_rows, Cinp).astype(jnp.bfloat16)

    out2 = _stage2_call(x1flat, w2p, s2p, xdflat, wdp, sdp, Ho, Wo)  # (N, Ho*Wp, Cpad)
    out = out2.reshape(N, Ho, Wp, Cpad)[:, :, :Wo, :Cout]            # drop garbage cols/lanes
    return jnp.transpose(out, (0, 3, 1, 2))                          # NHWC -> NCHW


# ---------------------------------------------------------------------------
# Deterministic parameter initialization (shapes from the module's __init__)
# ---------------------------------------------------------------------------
def init_params(key, input_dim, output_dim):
    ks = jax.random.split(key, 12)
    f32 = jnp.float32
    return {
        "w1": 0.1 * jax.random.normal(ks[0], (output_dim, input_dim, 3, 3), f32),
        "b1": 0.1 * jax.random.normal(ks[1], (output_dim,), f32),
        "bn1_g": 1.0 + 0.1 * jax.random.normal(ks[2], (output_dim,), f32),
        "bn1_b": 0.1 * jax.random.normal(ks[3], (output_dim,), f32),
        "bn1_m": 0.05 * jax.random.normal(ks[4], (output_dim,), f32),
        "bn1_v": 0.5 + jnp.abs(jax.random.normal(ks[5], (output_dim,), f32)) * 0.2,
        "w2": 0.1 * jax.random.normal(ks[6], (output_dim, output_dim, 3, 3), f32),
        "b2": 0.1 * jax.random.normal(ks[7], (output_dim,), f32),
        "bn2_g": 1.0 + 0.1 * jax.random.normal(ks[8], (output_dim,), f32),
        "bn2_b": 0.1 * jax.random.normal(ks[9], (output_dim,), f32),
        "bn2_m": 0.05 * jax.random.normal(ks[10], (output_dim,), f32),
        "bn2_v": 0.5 + jnp.abs(jax.random.normal(ks[11], (output_dim,), f32)) * 0.2,
        "wd": 0.1 * jax.random.normal(jax.random.fold_in(key, 100),
                                      (output_dim, input_dim, 1, 1), f32),
        "bnd_g": 1.0 + 0.1 * jax.random.normal(jax.random.fold_in(key, 101), (output_dim,), f32),
        "bnd_b": 0.1 * jax.random.normal(jax.random.fold_in(key, 102), (output_dim,), f32),
        "bnd_m": 0.05 * jax.random.normal(jax.random.fold_in(key, 103), (output_dim,), f32),
        "bnd_v": 0.5 + jnp.abs(jax.random.normal(jax.random.fold_in(key, 104), (output_dim,), f32)) * 0.2,
    }


if __name__ == "__main__":
    key = jax.random.PRNGKey(0)
    N, Cin, Cout, H, W = 2, 4, 8, 16, 16

    params = init_params(jax.random.fold_in(key, 1), Cin, Cout)
    x = jax.random.normal(jax.random.fold_in(key, 2), (N, Cin, H, W), jnp.float32)

    fwd = jax.jit(functools.partial(basic_block_downsample_forward, params=params))
    out = jax.block_until_ready(fwd(x))
    assert out.shape == (N, Cout, H // 2, W // 2), out.shape
    print("KERNEL_OK")
</pallas_src>

<mosaic_0001>
module attributes {stable_mosaic.version = 11 : i64} {
  func.func @_stage1_kernel(%arg0: i32, %arg1: memref<128x128xbf16, #tpu.memory_space<vmem>>, %arg2: memref<128x128xbf16, #tpu.memory_space<vmem>>, %arg3: memref<1x128xf32, #tpu.memory_space<vmem>>, %arg4: memref<128x128xf32, #tpu.memory_space<vmem>>) attributes {dimension_semantics = [#tpu.dimension_semantics<parallel>], iteration_bounds = array<i64: 1>, scalar_prefetch = 0 : i64, scratch_operands = 0 : i64, tpu.core_type = #tpu.core_type<tc>, window_params = [{transform_indices = @transform_0, window_bounds = array<i64: 128, 128>}, {pipeline_mode = #tpu.pipeline_mode<synchronous>, transform_indices = @transform_1, window_bounds = array<i64: 128, 128>}, {pipeline_mode = #tpu.pipeline_mode<synchronous>, transform_indices = @transform_2, window_bounds = array<i64: 1, 128>}, {transform_indices = @transform_3, window_bounds = array<i64: 128, 128>}]} {
    %c0 = arith.constant 0 : index
    %c0_0 = arith.constant 0 : index
    %0 = vector.load %arg1[%c0, %c0_0] : memref<128x128xbf16, #tpu.memory_space<vmem>>, vector<128x128xbf16>
    %c0_1 = arith.constant 0 : index
    %c0_2 = arith.constant 0 : index
    %1 = vector.load %arg2[%c0_1, %c0_2] : memref<128x128xbf16, #tpu.memory_space<vmem>>, vector<128x128xbf16>
    %cst = arith.constant dense<0.000000e+00> : vector<128x128xf32>
    %2 = tpu.matmul %0, %1, %cst {dimension_numbers = #tpu.dot_dimension_numbers<[1], [0], [0], [1], [0, 0, 1, 1], [], []>} : vector<128x128xbf16>, vector<128x128xbf16>, vector<128x128xf32> -> vector<128x128xf32>
    %c0_3 = arith.constant 0 : index
    %c0_4 = arith.constant 0 : index
    %3 = vector.load %arg3[%c0_3, %c0_4] : memref<1x128xf32, #tpu.memory_space<vmem>>, vector<1x128xf32>
    %4 = vector.broadcast %3 : vector<1x128xf32> to vector<128x128xf32>
    %5 = arith.addf %2, %4 : vector<128x128xf32>
    %cst_5 = arith.constant 0.000000e+00 : f32
    %6 = vector.broadcast %cst_5 : f32 to vector<128x128xf32>
    %7 = arith.cmpf ogt, %5, %6 : vector<128x128xf32>
    %cst_6 = arith.constant 5.000000e-02 : f32
    %8 = vector.broadcast %cst_6 : f32 to vector<128x128xf32>
    %9 = arith.mulf %8, %5 : vector<128x128xf32>
    %10 = arith.select %7, %5, %9 : vector<128x128xi1>, vector<128x128xf32>
    %c0_7 = arith.constant 0 : index
    %c0_8 = arith.constant 0 : index
    %11 = vector.load %arg4[%c0_7, %c0_8] : memref<128x128xf32, #tpu.memory_space<vmem>>, vector<128x128xf32>
    tpu.vector_store %arg4[%c0_7, %c0_8], %10 {strides = array<i32>} : memref<128x128xf32, #tpu.memory_space<vmem>>, vector<128x128xf32>,
    return
  }
  func.func @transform_0(%arg0: i32) -> (i32, i32) {
    %c0_i32 = arith.constant 0 : i32
    %c0_i32_0 = arith.constant 0 : i32
    return %arg0, %c0_i32 : i32, i32
  }
  func.func @transform_1(%arg0: i32) -> (i32, i32) {
    %c0_i32 = arith.constant 0 : i32
    %c0_i32_0 = arith.constant 0 : i32
    %c0_i32_1 = arith.constant 0 : i32
    return %c0_i32, %c0_i32_0 : i32, i32
  }
  func.func @transform_2(%arg0: i32) -> (i32, i32) {
    %c0_i32 = arith.constant 0 : i32
    %c0_i32_0 = arith.constant 0 : i32
    %c0_i32_1 = arith.constant 0 : i32
    return %c0_i32, %c0_i32_0 : i32, i32
  }
  func.func @transform_3(%arg0: i32) -> (i32, i32) {
    %c0_i32 = arith.constant 0 : i32
    %c0_i32_0 = arith.constant 0 : i32
    return %arg0, %c0_i32 : i32, i32
  }
}

module attributes {stable_mosaic.version = 11 : i64} {
  func.func @_stage2_kernel(%arg0: i32, %arg1: memref<1x104x128xf32, #tpu.memory_space<vmem>>, %arg2: memref<9x128x128xbf16, #tpu.memory_space<vmem>>, %arg3: memref<1x128xf32, #tpu.memory_space<vmem>>, %arg4: memref<1x80x128xbf16, #tpu.memory_space<vmem>>, %arg5: memref<128x128xbf16, #tpu.memory_space<vmem>>, %arg6: memref<1x128xf32, #tpu.memory_space<vmem>>, %arg7: memref<1x80x128xf32, #tpu.memory_space<vmem>>) attributes {dimension_semantics = [#tpu.dimension_semantics<parallel>], iteration_bounds = array<i64: 2>, scalar_prefetch = 0 : i64, scratch_operands = 0 : i64, tpu.core_type = #tpu.core_type<tc>, window_params = [{transform_indices = @transform_0, window_bounds = array<i64: 1, 104, 128>}, {pipeline_mode = #tpu.pipeline_mode<synchronous>, transform_indices = @transform_1, window_bounds = array<i64: 9, 128, 128>}, {pipeline_mode = #tpu.pipeline_mode<synchronous>, transform_indices = @transform_2, window_bounds = array<i64: 1, 128>}, {transform_indices = @transform_3, window_bounds = array<i64: 1, 80, 128>}, {pipeline_mode = #tpu.pipeline_mode<synchronous>, transform_indices = @transform_4, window_bounds = array<i64: 128, 128>}, {pipeline_mode = #tpu.pipeline_mode<synchronous>, transform_indices = @transform_5, window_bounds = array<i64: 1, 128>}, {transform_indices = @transform_6, window_bounds = array<i64: 1, 80, 128>}]} {
    %cst = arith.constant 0.000000e+00 : f32
    %0 = vector.broadcast %cst : f32 to vector<80x128xf32>
    %c0 = arith.constant 0 : index
    %c0_0 = arith.constant 0 : index
    %c0_1 = arith.constant 0 : index
    %1 = vector.load %arg1[%c0, %c0_0, %c0_1] : memref<1x104x128xf32, #tpu.memory_space<vmem>>, vector<1x80x128xf32>
    %2 = vector.shape_cast %1 : vector<1x80x128xf32> to vector<80x128xf32>
    %3 = arith.truncf %2 : vector<80x128xf32> to vector<80x128xbf16>
    %c0_2 = arith.constant 0 : index
    %c0_3 = arith.constant 0 : index
    %c0_4 = arith.constant 0 : index
    %4 = vector.load %arg2[%c0_2, %c0_3, %c0_4] : memref<9x128x128xbf16, #tpu.memory_space<vmem>>, vector<1x128x128xbf16>
    %5 = vector.shape_cast %4 : vector<1x128x128xbf16> to vector<128x128xbf16>
    %cst_5 = arith.constant dense<0.000000e+00> : vector<80x128xf32>
    %6 = tpu.matmul %3, %5, %cst_5 {dimension_numbers = #tpu.dot_dimension_numbers<[1], [0], [0], [1], [0, 0, 1, 1], [], []>} : vector<80x128xbf16>, vector<128x128xbf16>, vector<80x128xf32> -> vector<80x128xf32>
    %7 = arith.addf %0, %6 : vector<80x128xf32>
    %c0_6 = arith.constant 0 : index
    %c1 = arith.constant 1 : index
    %c0_7 = arith.constant 0 : index
    %8 = vector.load %arg1[%c0_6, %c1, %c0_7] : memref<1x104x128xf32, #tpu.memory_space<vmem>>, vector<1x80x128xf32>
    %9 = vector.shape_cast %8 : vector<1x80x128xf32> to vector<80x128xf32>
    %10 = arith.truncf %9 : vector<80x128xf32> to vector<80x128xbf16>
    %c1_8 = arith.constant 1 : index
    %c0_9 = arith.constant 0 : index
    %c0_10 = arith.constant 0 : index
    %11 = vector.load %arg2[%c1_8, %c0_9, %c0_10] : memref<9x128x128xbf16, #tpu.memory_space<vmem>>, vector<1x128x128xbf16>
    %12 = vector.shape_cast %11 : vector<1x128x128xbf16> to vector<128x128xbf16>
    %cst_11 = arith.constant dense<0.000000e+00> : vector<80x128xf32>
    %13 = tpu.matmul %10, %12, %cst_11 {dimension_numbers = #tpu.dot_dimension_numbers<[1], [0], [0], [1], [0, 0, 1, 1], [], []>} : vector<80x128xbf16>, vector<128x128xbf16>, vector<80x128xf32> -> vector<80x128xf32>
    %14 = arith.addf %7, %13 : vector<80x128xf32>
    %c0_12 = arith.constant 0 : index
    %c2 = arith.constant 2 : index
    %c0_13 = arith.constant 0 : index
    %15 = vector.load %arg1[%c0_12, %c2, %c0_13] : memref<1x104x128xf32, #tpu.memory_space<vmem>>, vector<1x80x128xf32>
    %16 = vector.shape_cast %15 : vector<1x80x128xf32> to vector<80x128xf32>
    %17 = arith.truncf %16 : vector<80x128xf32> to vector<80x128xbf16>
    %c2_14 = arith.constant 2 : index
    %c0_15 = arith.constant 0 : index
    %c0_16 = arith.constant 0 : index
    %18 = vector.load %arg2[%c2_14, %c0_15, %c0_16] : memref<9x128x128xbf16, #tpu.memory_space<vmem>>, vector<1x128x128xbf16>
    %19 = vector.shape_cast %18 : vector<1x128x128xbf16> to vector<128x128xbf16>
    %cst_17 = arith.constant dense<0.000000e+00> : vector<80x128xf32>
    %20 = tpu.matmul %17, %19, %cst_17 {dimension_numbers = #tpu.dot_dimension_numbers<[1], [0], [0], [1], [0, 0, 1, 1], [], []>} : vector<80x128xbf16>, vector<128x128xbf16>, vector<80x128xf32> -> vector<80x128xf32>
    %21 = arith.addf %14, %20 : vector<80x128xf32>
    %c0_18 = arith.constant 0 : index
    %c10 = arith.constant 10 : index
    %c0_19 = arith.constant 0 : index
    %22 = vector.load %arg1[%c0_18, %c10, %c0_19] : memref<1x104x128xf32, #tpu.memory_space<vmem>>, vector<1x80x128xf32>
    %23 = vector.shape_cast %22 : vector<1x80x128xf32> to vector<80x128xf32>
    %24 = arith.truncf %23 : vector<80x128xf32> to vector<80x128xbf16>
    %c3 = arith.constant 3 : index
    %c0_20 = arith.constant 0 : index
    %c0_21 = arith.constant 0 : index
    %25 = vector.load %arg2[%c3, %c0_20, %c0_21] : memref<9x128x128xbf16, #tpu.memory_space<vmem>>, vector<1x128x128xbf16>
    %26 = vector.shape_cast %25 : vector<1x128x128xbf16> to vector<128x128xbf16>
    %cst_22 = arith.constant dense<0.000000e+00> : vector<80x128xf32>
    %27 = tpu.matmul %24, %26, %cst_22 {dimension_numbers = #tpu.dot_dimension_numbers<[1], [0], [0], [1], [0, 0, 1, 1], [], []>} : vector<80x128xbf16>, vector<128x128xbf16>, vector<80x128xf32> -> vector<80x128xf32>
    %28 = arith.addf %21, %27 : vector<80x128xf32>
    %c0_23 = arith.constant 0 : index
    %c11 = arith.constant 11 : index
    %c0_24 = arith.constant 0 : index
    %29 = vector.load %arg1[%c0_23, %c11, %c0_24] : memref<1x104x128xf32, #tpu.memory_space<vmem>>, vector<1x80x128xf32>
    %30 = vector.shape_cast %29 : vector<1x80x128xf32> to vector<80x128xf32>
    %31 = arith.truncf %30 : vector<80x128xf32> to vector<80x128xbf16>
    %c4 = arith.constant 4 : index
    %c0_25 = arith.constant 0 : index
    %c0_26 = arith.constant 0 : index
    %32 = vector.load %arg2[%c4, %c0_25, %c0_26] : memref<9x128x128xbf16, #tpu.memory_space<vmem>>, vector<1x128x128xbf16>
    %33 = vector.shape_cast %32 : vector<1x128x128xbf16> to vector<128x128xbf16>
    %cst_27 = arith.constant dense<0.000000e+00> : vector<80x128xf32>
    %34 = tpu.matmul %31, %33, %cst_27 {dimension_numbers = #tpu.dot_dimension_numbers<[1], [0], [0], [1], [0, 0, 1, 1], [], []>} : vector<80x128xbf16>, vector<128x128xbf16>, vector<80x128xf32> -> vector<80x128xf32>
    %35 = arith.addf %28, %34 : vector<80x128xf32>
    %c0_28 = arith.constant 0 : index
    %c12 = arith.constant 12 : index
    %c0_29 = arith.constant 0 : index
    %36 = vector.load %arg1[%c0_28, %c12, %c0_29] : memref<1x104x128xf32, #tpu.memory_space<vmem>>, vector<1x80x128xf32>
    %37 = vector.shape_cast %36 : vector<1x80x128xf32> to vector<80x128xf32>
    %38 = arith.truncf %37 : vector<80x128xf32> to vector<80x128xbf16>
    %c5 = arith.constant 5 : index
    %c0_30 = arith.constant 0 : index
    %c0_31 = arith.constant 0 : index
    %39 = vector.load %arg2[%c5, %c0_30, %c0_31] : memref<9x128x128xbf16, #tpu.memory_space<vmem>>, vector<1x128x128xbf16>
    %40 = vector.shape_cast %39 : vector<1x128x128xbf16> to vector<128x128xbf16>
    %cst_32 = arith.constant dense<0.000000e+00> : vector<80x128xf32>
    %41 = tpu.matmul %38, %40, %cst_32 {dimension_numbers = #tpu.dot_dimension_numbers<[1], [0], [0], [1], [0, 0, 1, 1], [], []>} : vector<80x128xbf16>, vector<128x128xbf16>, vector<80x128xf32> -> vector<80x128xf32>
    %42 = arith.addf %35, %41 : vector<80x128xf32>
    %c0_33 = arith.constant 0 : index
    %c20 = arith.constant 20 : index
    %c0_34 = arith.constant 0 : index
    %43 = vector.load %arg1[%c0_33, %c20, %c0_34] : memref<1x104x128xf32, #tpu.memory_space<vmem>>, vector<1x80x128xf32>
    %44 = vector.shape_cast %43 : vector<1x80x128xf32> to vector<80x128xf32>
    %45 = arith.truncf %44 : vector<80x128xf32> to vector<80x128xbf16>
    %c6 = arith.constant 6 : index
    %c0_35 = arith.constant 0 : index
    %c0_36 = arith.constant 0 : index
    %46 = vector.load %arg2[%c6, %c0_35, %c0_36] : memref<9x128x128xbf16, #tpu.memory_space<vmem>>, vector<1x128x128xbf16>
    %47 = vector.shape_cast %46 : vector<1x128x128xbf16> to vector<128x128xbf16>
    %cst_37 = arith.constant dense<0.000000e+00> : vector<80x128xf32>
    %48 = tpu.matmul %45, %47, %cst_37 {dimension_numbers = #tpu.dot_dimension_numbers<[1], [0], [0], [1], [0, 0, 1, 1], [], []>} : vector<80x128xbf16>, vector<128x128xbf16>, vector<80x128xf32> -> vector<80x128xf32>
    %49 = arith.addf %42, %48 : vector<80x128xf32>
    %c0_38 = arith.constant 0 : index
    %c21 = arith.constant 21 : index
    %c0_39 = arith.constant 0 : index
    %50 = vector.load %arg1[%c0_38, %c21, %c0_39] : memref<1x104x128xf32, #tpu.memory_space<vmem>>, vector<1x80x128xf32>
    %51 = vector.shape_cast %50 : vector<1x80x128xf32> to vector<80x128xf32>
    %52 = arith.truncf %51 : vector<80x128xf32> to vector<80x128xbf16>
    %c7 = arith.constant 7 : index
    %c0_40 = arith.constant 0 : index
    %c0_41 = arith.constant 0 : index
    %53 = vector.load %arg2[%c7, %c0_40, %c0_41] : memref<9x128x128xbf16, #tpu.memory_space<vmem>>, vector<1x128x128xbf16>
    %54 = vector.shape_cast %53 : vector<1x128x128xbf16> to vector<128x128xbf16>
    %cst_42 = arith.constant dense<0.000000e+00> : vector<80x128xf32>
    %55 = tpu.matmul %52, %54, %cst_42 {dimension_numbers = #tpu.dot_dimension_numbers<[1], [0], [0], [1], [0, 0, 1, 1], [], []>} : vector<80x128xbf16>, vector<128x128xbf16>, vector<80x128xf32> -> vector<80x128xf32>
    %56 = arith.addf %49, %55 : vector<80x128xf32>
    %c0_43 = arith.constant 0 : index
    %c22 = arith.constant 22 : index
    %c0_44 = arith.constant 0 : index
    %57 = vector.load %arg1[%c0_43, %c22, %c0_44] : memref<1x104x128xf32, #tpu.memory_space<vmem>>, vector<1x80x128xf32>
    %58 = vector.shape_cast %57 : vector<1x80x128xf32> to vector<80x128xf32>
    %59 = arith.truncf %58 : vector<80x128xf32> to vector<80x128xbf16>
    %c8 = arith.constant 8 : index
    %c0_45 = arith.constant 0 : index
    %c0_46 = arith.constant 0 : index
    %60 = vector.load %arg2[%c8, %c0_45, %c0_46] : memref<9x128x128xbf16, #tpu.memory_space<vmem>>, vector<1x128x128xbf16>
    %61 = vector.shape_cast %60 : vector<1x128x128xbf16> to vector<128x128xbf16>
    %cst_47 = arith.constant dense<0.000000e+00> : vector<80x128xf32>
    %62 = tpu.matmul %59, %61, %cst_47 {dimension_numbers = #tpu.dot_dimension_numbers<[1], [0], [0], [1], [0, 0, 1, 1], [], []>} : vector<80x128xbf16>, vector<128x128xbf16>, vector<80x128xf32> -> vector<80x128xf32>
    %63 = arith.addf %56, %62 : vector<80x128xf32>
    %c0_48 = arith.constant 0 : index
    %c0_49 = arith.constant 0 : index
    %64 = vector.load %arg3[%c0_48, %c0_49] : memref<1x128xf32, #tpu.memory_space<vmem>>, vector<1x128xf32>
    %65 = vector.broadcast %64 : vector<1x128xf32> to vector<80x128xf32>
    %66 = arith.addf %63, %65 : vector<80x128xf32>
    %c0_50 = arith.constant 0 : index
    %c0_51 = arith.constant 0 : index
    %c0_52 = arith.constant 0 : index
    %67 = vector.load %arg4[%c0_50, %c0_51, %c0_52] : memref<1x80x128xbf16, #tpu.memory_space<vmem>>, vector<1x80x128xbf16>
    %68 = vector.shape_cast %67 : vector<1x80x128xbf16> to vector<80x128xbf16>
    %c0_53 = arith.constant 0 : index
    %c0_54 = arith.constant 0 : index
    %69 = vector.load %arg5[%c0_53, %c0_54] : memref<128x128xbf16, #tpu.memory_space<vmem>>, vector<128x128xbf16>
    %cst_55 = arith.constant dense<0.000000e+00> : vector<80x128xf32>
    %70 = tpu.matmul %68, %69, %cst_55 {dimension_numbers = #tpu.dot_dimension_numbers<[1], [0], [0], [1], [0, 0, 1, 1], [], []>} : vector<80x128xbf16>, vector<128x128xbf16>, vector<80x128xf32> -> vector<80x128xf32>
    %71 = arith.addf %66, %70 : vector<80x128xf32>
    %c0_56 = arith.constant 0 : index
    %c0_57 = arith.constant 0 : index
    %72 = vector.load %arg6[%c0_56, %c0_57] : memref<1x128xf32, #tpu.memory_space<vmem>>, vector<1x128xf32>
    %73 = vector.broadcast %72 : vector<1x128xf32> to vector<80x128xf32>
    %74 = arith.addf %71, %73 : vector<80x128xf32>
    %cst_58 = arith.constant 0.000000e+00 : f32
    %75 = vector.broadcast %cst_58 : f32 to vector<80x128xf32>
    %76 = arith.cmpf ogt, %74, %75 : vector<80x128xf32>
    %cst_59 = arith.constant 5.000000e-02 : f32
    %77 = vector.broadcast %cst_59 : f32 to vector<80x128xf32>
    %78 = arith.mulf %77, %74 : vector<80x128xf32>
    %79 = arith.select %76, %74, %78 : vector<80x128xi1>, vector<80x128xf32>
    %c0_60 = arith.constant 0 : index
    %c0_61 = arith.constant 0 : index
    %c0_62 = arith.constant 0 : index
    %80 = vector.load %arg7[%c0_60, %c0_61, %c0_62] : memref<1x80x128xf32, #tpu.memory_space<vmem>>, vector<1x80x128xf32>
    %81 = vector.shape_cast %80 : vector<1x80x128xf32> to vector<80x128xf32>
    %82 = vector.shape_cast %79 : vector<80x128xf32> to vector<1x80x128xf32>
    tpu.vector_store %arg7[%c0_60, %c0_61, %c0_62], %82 {strides = array<i32>} : memref<1x80x128xf32, #tpu.memory_space<vmem>>, vector<1x80x128xf32>,
    return
  }
  func.func @transform_0(%arg0: i32) -> (i32, i32, i32) {
    %c0_i32 = arith.constant 0 : i32
    %c0_i32_0 = arith.constant 0 : i32
    %c0_i32_1 = arith.constant 0 : i32
    return %arg0, %c0_i32, %c0_i32_0 : i32, i32, i32
  }
  func.func @transform_1(%arg0: i32) -> (i32, i32, i32) {
    %c0_i32 = arith.constant 0 : i32
    %c0_i32_0 = arith.constant 0 : i32
    %c0_i32_1 = arith.constant 0 : i32
    %c0_i32_2 = arith.constant 0 : i32
    return %c0_i32, %c0_i32_0, %c0_i32_1 : i32, i32, i32
  }
  func.func @transform_2(%arg0: i32) -> (i32, i32) {
    %c0_i32 = arith.constant 0 : i32
    %c0_i32_0 = arith.constant 0 : i32
    %c0_i32_1 = arith.constant 0 : i32
    return %c0_i32, %c0_i32_0 : i32, i32
  }
  func.func @transform_3(%arg0: i32) -> (i32, i32, i32) {
    %c0_i32 = arith.constant 0 : i32
    %c0_i32_0 = arith.constant 0 : i32
    %c0_i32_1 = arith.constant 0 : i32
    return %arg0, %c0_i32, %c0_i32_0 : i32, i32, i32
  }
  func.func @transform_4(%arg0: i32) -> (i32, i32) {
    %c0_i32 = arith.constant 0 : i32
    %c0_i32_0 = arith.constant 0 : i32
    %c0_i32_1 = arith.constant 0 : i32
    return %c0_i32, %c0_i32_0 : i32, i32
  }
  func.func @transform_5(%arg0: i32) -> (i32, i32) {
    %c0_i32 = arith.constant 0 : i32
    %c0_i32_0 = arith.constant 0 : i32
    %c0_i32_1 = arith.constant 0 : i32
    return %c0_i32, %c0_i32_0 : i32, i32
  }
  func.func @transform_6(%arg0: i32) -> (i32, i32, i32) {
    %c0_i32 = arith.constant 0 : i32
    %c0_i32_0 = arith.constant 0 : i32
    %c0_i32_1 = arith.constant 0 : i32
    return %arg0, %c0_i32, %c0_i32_0 : i32, i32, i32
  }
}

</mosaic_0001>

<llo_original>
// kernel: basic_block_downsample_forward.2
$region0: #{basic_block_downsample_forward.2}
  #allocation0 [shape = 'u32[]', space=smem, size = 0x4, offset = 0x4, fixed_abs, tag = 'smem constant byte address 0x4 - core index']
  #allocation1 [shape = 'u32[144,128]{1,0:T(1,128)}', space=vmem, size = 0x12000, scoped, tag = 'internal scratch']
  %s0 = inlined_call_operand.vmem [shape: bf16[128,128], index: 0, kind: input, shape index: {}]
  %s1 = inlined_call_operand.vmem [shape: bf16[128,128], index: 1, kind: input, shape index: {}]
  %s2 = inlined_call_operand.vmem [shape: f32[1,128], index: 2, kind: input, shape index: {}]
  %s3 = inlined_call_operand.vmem [shape: f32[128,128], index: 3, kind: output, shape index: {}]
  %s4 = sld [smem:[#allocation0]]
  $region22: #{basic_block_downsample_forward.2} parent=0
    _
  %s6 = ssub.s32 1, %s4
  %s7 = scalar_select 0, %s6, %s4
  // Predicated region
  $region2: #{basic_block_downsample_forward.2} parent=0 // pred_check
    _
  $region3: #{basic_block_downsample_forward.2} parent=0 // pred_check_branch
    %9 = sbr.rel (0) target = $region5
  $region4: #{basic_block_downsample_forward.2} parent=0 // pred_region
    _
  $region5: #{basic_block_downsample_forward.2} parent=0 // pred_fallthru
    _
  // Predicated region
  $region6: #{basic_block_downsample_forward.2} parent=0 // pred_check
    _
  $region7: #{basic_block_downsample_forward.2} parent=0 // pred_check_branch
    %11 = sbr.rel (0) target = $region9
  $region8: #{basic_block_downsample_forward.2} parent=0 // pred_region
    _
  $region9: #{basic_block_downsample_forward.2} parent=0 // pred_fallthru
    _
  // Predicated region
  $region10: #{basic_block_downsample_forward.2} parent=0 // pred_check
    _
  $region11: #{basic_block_downsample_forward.2} parent=0 // pred_check_branch
    %13 = sbr.rel (0) target = $region13
  $region12: #{basic_block_downsample_forward.2} parent=0 // pred_region
    _
  $region13: #{basic_block_downsample_forward.2} parent=0 // pred_fallthru
    _
  %v15 = vld [vmem:[%s0] sm:$0xf]
  %v16 = vld [vmem:[%s0 + $0x4] sm:$0xf]
  %v17 = vld [vmem:[%s0 + $0x8] sm:$0xf]
  %v18 = vld [vmem:[%s0 + $0xc] sm:$0xf]
  %v19 = vld [vmem:[%s0 + $0x10] sm:$0xf]
  %v20 = vld [vmem:[%s0 + $0x14] sm:$0xf]
  %v21 = vld [vmem:[%s0 + $0x18] sm:$0xf]
  %v22 = vld [vmem:[%s0 + $0x1c] sm:$0xf]
  %v23 = vld [vmem:[%s0 + $0x20] sm:$0xf]
  %v24 = vld [vmem:[%s0 + $0x24] sm:$0xf]
  %v25 = vld [vmem:[%s0 + $0x28] sm:$0xf]
  %v26 = vld [vmem:[%s0 + $0x2c] sm:$0xf]
  %v27 = vld [vmem:[%s0 + $0x30] sm:$0xf]
  %v28 = vld [vmem:[%s0 + $0x34] sm:$0xf]
  %v29 = vld [vmem:[%s0 + $0x38] sm:$0xf]
  %v30 = vld [vmem:[%s0 + $0x3c] sm:$0xf]
  %v31 = vld [vmem:[%s1] sm:$0xf]
  %v32 = vld [vmem:[%s1 + $0x4] sm:$0xf]
  %v33 = vld [vmem:[%s1 + $0x8] sm:$0xf]
  %v34 = vld [vmem:[%s1 + $0xc] sm:$0xf]
  %v35 = vld [vmem:[%s1 + $0x10] sm:$0xf]
  %v36 = vld [vmem:[%s1 + $0x14] sm:$0xf]
  %v37 = vld [vmem:[%s1 + $0x18] sm:$0xf]
  %v38 = vld [vmem:[%s1 + $0x1c] sm:$0xf]
  %v39 = vld [vmem:[%s1 + $0x20] sm:$0xf]
  %v40 = vld [vmem:[%s1 + $0x24] sm:$0xf]
  %v41 = vld [vmem:[%s1 + $0x28] sm:$0xf]
  %v42 = vld [vmem:[%s1 + $0x2c] sm:$0xf]
  %v43 = vld [vmem:[%s1 + $0x30] sm:$0xf]
  %v44 = vld [vmem:[%s1 + $0x34] sm:$0xf]
  %v45 = vld [vmem:[%s1 + $0x38] sm:$0xf]
  %v46 = vld [vmem:[%s1 + $0x3c] sm:$0xf]
  %v47 = vld [vmem:[%s2] sm:$0x1]
  %v49 = vlaneseq
  %v50 = vshrl.u32 %v49, 7
  %v51 = vsub.s32 0, %v50
  %v52 = vrot.slane %v47, %v51
  %v70 = vunpack.c.l.b16 %v15
  %v71 = vunpack.c.l.b16 %v16
  %v72 = vunpack.c.l.b16 %v17
  %v73 = vunpack.c.l.b16 %v18
  %v74 = vunpack.c.l.b16 %v19
  %v75 = vunpack.c.l.b16 %v20
  %v76 = vunpack.c.l.b16 %v21
  %v77 = vunpack.c.l.b16 %v22
  %v78 = vunpack.c.l.b16 %v23
  %v79 = vunpack.c.l.b16 %v24
  %v80 = vunpack.c.l.b16 %v25
  %v81 = vunpack.c.l.b16 %v26
  %v82 = vunpack.c.l.b16 %v27
  %v83 = vunpack.c.l.b16 %v28
  %v84 = vunpack.c.l.b16 %v29
  %v85 = vunpack.c.l.b16 %v30
  %v86 = vpack.c.b16 %v71, %v70
  %v87 = vpack.c.b16 %v73, %v72
  %v88 = vpack.c.b16 %v75, %v74
  %v89 = vpack.c.b16 %v77, %v76
  %v90 = vpack.c.b16 %v79, %v78
  %v91 = vpack.c.b16 %v81, %v80
  %v92 = vpack.c.b16 %v83, %v82
  %v93 = vpack.c.b16 %v85, %v84
  %v118 = vunpack.c.l.b16 %v31
  %v119 = vunpack.c.l.b16 %v32
  %v120 = vunpack.c.l.b16 %v33
  %v121 = vunpack.c.l.b16 %v34
  %v122 = vunpack.c.l.b16 %v35
  %v123 = vunpack.c.l.b16 %v36
  %v124 = vunpack.c.l.b16 %v37
  %v125 = vunpack.c.l.b16 %v38
  %v126 = vunpack.c.l.b16 %v39
  %v127 = vunpack.c.l.b16 %v40
  %v128 = vunpack.c.l.b16 %v41
  %v129 = vunpack.c.l.b16 %v42
  %v130 = vunpack.c.l.b16 %v43
  %v131 = vunpack.c.l.b16 %v44
  %v132 = vunpack.c.l.b16 %v45
  %v133 = vunpack.c.l.b16 %v46
  %v134 = vpack.c.b16 %v119, %v118
  %v135 = vpack.c.b16 %v121, %v120
  %v136 = vpack.c.b16 %v123, %v122
  %v137 = vpack.c.b16 %v125, %v124
  %v138 = vpack.c.b16 %v127, %v126
  %v139 = vpack.c.b16 %v129, %v128
  %v140 = vpack.c.b16 %v131, %v130
  %v141 = vpack.c.b16 %v133, %v132
  %150 = vmatprep.subr.bf16.mxu0 0
  %151 = vmatpush1.bf16.msra.mxu0 %v141
  %152 = vmatprep.subr.bf16.mxu0 0
  %153 = vmatpush1.bf16.msra.mxu0 %v140
  %154 = vmatprep.subr.bf16.mxu0 0
  %155 = vmatpush1.bf16.msra.mxu0 %v139
  %156 = vmatprep.subr.bf16.mxu0 0
  %157 = vmatpush1.bf16.msra.mxu0 %v138
  %158 = vmatprep.subr.bf16.mxu0 0
  %159 = vmatpush1.bf16.msra.mxu0 %v137
  %160 = vmatprep.subr.bf16.mxu0 0
  %161 = vmatpush1.bf16.msra.mxu0 %v136
  %162 = vmatprep.subr.bf16.mxu0 0
  %163 = vmatpush1.bf16.msra.mxu0 %v135
  %164 = vmatprep.subr.bf16.mxu0 0
  %165 = vmatpush1.bf16.msra.mxu0 %v134
  %166 = vmatprep.subr.bf16.mxu0 0
  %167 = vmatpush2.bf16.msra.mxu0 0
  %168 = vmatprep.subr.bf16.mxu0 0
  %169 = vmatpush2.bf16.msra.mxu0 0
  %170 = vmatprep.subr.bf16.mxu0 0
  %171 = vmatpush2.bf16.msra.mxu0 0
  %172 = vmatprep.subr.bf16.mxu0 0
  %173 = vmatpush2.bf16.msra.mxu0 0
  %174 = vmatprep.subr.bf16.mxu0 0
  %175 = vmatpush2.bf16.msra.mxu0 0
  %176 = vmatprep.subr.bf16.mxu0 0
  %177 = vmatpush2.bf16.msra.mxu0 0
  %178 = vmatprep.subr.bf16.mxu0 0
  %179 = vmatpush2.bf16.msra.mxu0 0
  %180 = vmatprep.subr.bf16.mxu0 0
  %181 = vmatpush2.bf16.msra.mxu0 0
  %182 = vmatprep.mubr.bf16.mxu0 0
  %183 = vmatmul.mubr.bf16.gmra.mxu0 %v86
  %v184 = vpop.f32.mrf.mxu0
  %v185 = vadd.f32 %v52, %v184
  %v186 = vpop.f32.mrf.mxu0
  %v187 = vpop.f32.mrf.mxu0
  %v188 = vadd.f32 %v52, %v187
  %v189 = vpop.f32.mrf.mxu0
  %190 = vmatprep.mubr.bf16.mxu0 0
  %191 = vmatmul.mubr.bf16.gmra.mxu0 %v87
  %v192 = vpop.f32.mrf.mxu0
  %v193 = vadd.f32 %v52, %v192
  %v194 = vpop.f32.mrf.mxu0
  %v195 = vpop.f32.mrf.mxu0
  %v196 = vadd.f32 %v52, %v195
  %v197 = vpop.f32.mrf.mxu0
  %198 = vmatprep.mubr.bf16.mxu0 0
  %199 = vmatmul.mubr.bf16.gmra.mxu0 %v88
  %v200 = vpop.f32.mrf.mxu0
  %v201 = vadd.f32 %v52, %v200
  %v202 = vpop.f32.mrf.mxu0
  %v203 = vpop.f32.mrf.mxu0
  %v204 = vadd.f32 %v52, %v203
  %v205 = vpop.f32.mrf.mxu0
  %206 = vmatprep.mubr.bf16.mxu0 0
  %207 = vmatmul.mubr.bf16.gmra.mxu0 %v89
  %v208 = vpop.f32.mrf.mxu0
  %v209 = vadd.f32 %v52, %v208
  %v210 = vpop.f32.mrf.mxu0
  %v211 = vpop.f32.mrf.mxu0
  %v212 = vadd.f32 %v52, %v211
  %v213 = vpop.f32.mrf.mxu0
  %214 = vmatprep.mubr.bf16.mxu0 0
  %215 = vmatmul.mubr.bf16.gmra.mxu0 %v90
  %v216 = vpop.f32.mrf.mxu0
  %v217 = vadd.f32 %v52, %v216
  %v218 = vpop.f32.mrf.mxu0
  %v219 = vpop.f32.mrf.mxu0
  %v220 = vadd.f32 %v52, %v219
  %v221 = vpop.f32.mrf.mxu0
  %222 = vmatprep.mubr.bf16.mxu0 0
  %223 = vmatmul.mubr.bf16.gmra.mxu0 %v91
  %v224 = vpop.f32.mrf.mxu0
  %v225 = vadd.f32 %v52, %v224
  %v226 = vpop.f32.mrf.mxu0
  %v227 = vpop.f32.mrf.mxu0
  %v228 = vadd.f32 %v52, %v227
  %v229 = vpop.f32.mrf.mxu0
  %230 = vmatprep.mubr.bf16.mxu0 0
  %231 = vmatmul.mubr.bf16.gmra.mxu0 %v92
  %v232 = vpop.f32.mrf.mxu0
  %v233 = vadd.f32 %v52, %v232
  %v234 = vpop.f32.mrf.mxu0
  %v235 = vpop.f32.mrf.mxu0
  %v236 = vadd.f32 %v52, %v235
  %v237 = vpop.f32.mrf.mxu0
  %238 = vmatprep.mubr.bf16.mxu0 0
  %239 = vmatmul.mubr.bf16.gmra.mxu0 %v93
  %v240 = vpop.f32.mrf.mxu0
  %v241 = vadd.f32 %v52, %v240
  %v242 = vpop.f32.mrf.mxu0
  %v243 = vpop.f32.mrf.mxu0
  %v244 = vadd.f32 %v52, %v243
  %v245 = vpop.f32.mrf.mxu0
  %246 = vdwg.mxu0
  %vm247 = vcmp.gt.f32.partialorder %v185, 0.0
  %vm248 = vcmp.gt.f32.partialorder %v188, 0.0
  %vm249 = vcmp.gt.f32.partialorder %v193, 0.0
  %vm250 = vcmp.gt.f32.partialorder %v196, 0.0
  %vm251 = vcmp.gt.f32.partialorder %v201, 0.0
  %vm252 = vcmp.gt.f32.partialorder %v204, 0.0
  %vm253 = vcmp.gt.f32.partialorder %v209, 0.0
  %vm254 = vcmp.gt.f32.partialorder %v212, 0.0
  %vm255 = vcmp.gt.f32.partialorder %v217, 0.0
  %vm256 = vcmp.gt.f32.partialorder %v220, 0.0
  %vm257 = vcmp.gt.f32.partialorder %v225, 0.0
  %vm258 = vcmp.gt.f32.partialorder %v228, 0.0
  %vm259 = vcmp.gt.f32.partialorder %v233, 0.0
  %vm260 = vcmp.gt.f32.partialorder %v236, 0.0
  %vm261 = vcmp.gt.f32.partialorder %v241, 0.0
  %vm262 = vcmp.gt.f32.partialorder %v244, 0.0
  %v263 = vmul.f32 %v185, 0.05
  %v264 = vmul.f32 %v188, 0.05
  %v265 = vmul.f32 %v193, 0.05
  %v266 = vmul.f32 %v196, 0.05
  %v267 = vmul.f32 %v201, 0.05
  %v268 = vmul.f32 %v204, 0.05
  %v269 = vmul.f32 %v209, 0.05
  %v270 = vmul.f32 %v212, 0.05
  %v271 = vmul.f32 %v217, 0.05
  %v272 = vmul.f32 %v220, 0.05
  %v273 = vmul.f32 %v225, 0.05
  %v274 = vmul.f32 %v228, 0.05
  %v275 = vmul.f32 %v233, 0.05
  %v276 = vmul.f32 %v236, 0.05
  %v277 = vmul.f32 %v241, 0.05
  %v278 = vmul.f32 %v244, 0.05
  %v279 = vsel %vm247, %v185, %v263
  %v280 = vsel %vm248, %v188, %v264
  %v281 = vsel %vm249, %v193, %v265
  %v282 = vsel %vm250, %v196, %v266
  %v283 = vsel %vm251, %v201, %v267
  %v284 = vsel %vm252, %v204, %v268
  %v285 = vsel %vm253, %v209, %v269
  %v286 = vsel %vm254, %v212, %v270
  %v287 = vsel %vm255, %v217, %v271
  %v288 = vsel %vm256, %v220, %v272
  %v289 = vsel %vm257, %v225, %v273
  %v290 = vsel %vm258, %v228, %v274
  %v291 = vsel %vm259, %v233, %v275
  %v292 = vsel %vm260, %v236, %v276
  %v293 = vsel %vm261, %v241, %v277
  %v294 = vsel %vm262, %v244, %v278
  %295 = vst [vmem:[%s3] sm:$0xff] %v279
  %296 = vst [vmem:[%s3 + $0x8] sm:$0xff] %v280
  %297 = vst [vmem:[%s3 + $0x10] sm:$0xff] %v281
  %298 = vst [vmem:[%s3 + $0x18] sm:$0xff] %v282
  %299 = vst [vmem:[%s3 + $0x20] sm:$0xff] %v283
  %300 = vst [vmem:[%s3 + $0x28] sm:$0xff] %v284
  %301 = vst [vmem:[%s3 + $0x30] sm:$0xff] %v285
  %302 = vst [vmem:[%s3 + $0x38] sm:$0xff] %v286
  %303 = vst [vmem:[%s3 + $0x40] sm:$0xff] %v287
  %304 = vst [vmem:[%s3 + $0x48] sm:$0xff] %v288
  %305 = vst [vmem:[%s3 + $0x50] sm:$0xff] %v289
  %306 = vst [vmem:[%s3 + $0x58] sm:$0xff] %v290
  %307 = vst [vmem:[%s3 + $0x60] sm:$0xff] %v291
  %308 = vst [vmem:[%s3 + $0x68] sm:$0xff] %v292
  %309 = vst [vmem:[%s3 + $0x70] sm:$0xff] %v293
  %310 = vst [vmem:[%s3 + $0x78] sm:$0xff] %v294
  // Predicated region
  $region14: #{basic_block_downsample_forward.2} parent=0 // pred_check
    _
  $region15: #{basic_block_downsample_forward.2} parent=0 // pred_check_branch
    %312 = sbr.rel (0) target = $region17
  $region16: #{basic_block_downsample_forward.2} parent=0 // pred_region
    _
  $region17: #{basic_block_downsample_forward.2} parent=0 // pred_fallthru
    _
  // Predicated region
  $region18: #{basic_block_downsample_forward.2} parent=0 // pred_check
    _
  $region19: #{basic_block_downsample_forward.2} parent=0 // pred_check_branch
    %314 = sbr.rel (0) target = $region21
  $region20: #{basic_block_downsample_forward.2} parent=0 // pred_region
    _
  $region21: #{basic_block_downsample_forward.2} parent=0 // pred_fallthru
    _

// kernel: basic_block_downsample_forward.3
$region0: #{basic_block_downsample_forward.3}
  #allocation0 [shape = 'u32[]', space=smem, size = 0x4, offset = 0x4, fixed_abs, tag = 'smem constant byte address 0x4 - core index']
  #allocation1 [shape = 'u32[144,128]{1,0:T(1,128)}', space=vmem, size = 0x12000, scoped, tag = 'internal scratch']
  %s0 = inlined_call_operand.vmem [shape: f32[2,104,128], index: 0, kind: input, shape index: {}]
  %s1 = inlined_call_operand.vmem [shape: bf16[9,128,128], index: 1, kind: input, shape index: {}]
  %s2 = inlined_call_operand.vmem [shape: f32[1,128], index: 2, kind: input, shape index: {}]
  %s3 = inlined_call_operand.vmem [shape: bf16[2,80,128], index: 3, kind: input, shape index: {}]
  %s4 = inlined_call_operand.vmem [shape: bf16[128,128], index: 4, kind: input, shape index: {}]
  %s5 = inlined_call_operand.vmem [shape: f32[1,128], index: 5, kind: input, shape index: {}]
  %s6 = inlined_call_operand.vmem [shape: f32[2,80,128], index: 6, kind: output, shape index: {}]
  %s7 = sld [smem:[#allocation0]]
  $region57: #{basic_block_downsample_forward.3} parent=0
    _
  %s9 = ssub.s32 1, %s7
  %s10 = scalar_select 0, %s9, %s7
  loop: start=0, step=1, limit=4
  $region2: #{basic_block_downsample_forward.3} parent=0 // loop_pre_header
    _
  $region3: #{basic_block_downsample_forward.3} parent=0 // loop_header
    %s12 = sphi 0, %s16
    %p13 = scmp.ge.s32.totalorder %s12, 4
    %s22 = sphi 0, %s24
    %s25 = sphi 0, %s22
    %s26 = sphi 0, %s25
    %s42 = sphi 0, %s26
    %s46 = sphi 0, %s46
    %s48 = sphi 0, %s46
    %s49 = sphi 0, %s48
    %s63 = sphi 0, %s49
    %s67 = sphi 0, %s67
    %s69 = sphi 0, %s67
    %s70 = sphi 0, %s69
    %s84 = sphi 0, %s70
    %s90 = sphi 0, %s92
    %s93 = sphi 0, %s90
    %s94 = sphi 0, %s93
    %s110 = sphi 0, %s94
    %s114 = sphi 0, %s114
    %s116 = sphi 0, %s114
    %s117 = sphi 0, %s116
    %s131 = sphi 0, %s117
    %s135 = sphi 0, %s135
    %s137 = sphi 0, %s135
    %s138 = sphi 0, %s137
    %s152 = sphi 0, %s138
    %s158 = sphi 0, %s160
    %s161 = sphi 0, %s158
    %s162 = sphi 0, %s161
    %s178 = sphi 0, %s162
  $region4: #{basic_block_downsample_forward.3} parent=0 // loop_header_branch
    %15 = sbr.rel (%p13) target = $region8
  $region5: #{basic_block_downsample_forward.3} parent=0 // loop_body
    %s17 = ssub.s32 %s12, 1
    %s18 = ssub.s32 %s12, 2
    %s19 = sadd.s32 %s12, 1
    %s20 = ssub.s32 %s12, %s19
    %p21 = scmp.eq.s32.totalorder %s20, 0
    %s23 = sadd.s32 %s22, 1
    %s24 = scalar_select %p21, %s22, %s23
    %p27 = pneg %p21
    %p28 = scmp.eq.s32.totalorder %s12, 1
    %p29 = por %p27, %p28
    %p30 = scmp.ne.s32.totalorder %s22, %s25
    %p31 = scmp.eq.s32.totalorder %s12, 0
    %p32 = por %p30, %p31
    %p33 = scmp.ne.s32.totalorder %s22, %s25
    %p34 = scmp.eq.s32.totalorder %s17, 1
    %p35 = por %p33, %p34
    %p36 = scmp.ne.s32.totalorder %s25, %s26
    %p37 = scmp.eq.s32.totalorder %s17, 0
    %p38 = por %p36, %p37
    %p39 = scmp.ne.s32.totalorder %s25, %s26
    %p40 = scmp.eq.s32.totalorder %s18, 1
    %p41 = por %p39, %p40
    %p43 = scmp.ne.s32.totalorder %s26, %s42
    %p44 = scmp.eq.s32.totalorder %s18, 0
    %p45 = por %p43, %p44
    %s47 = sadd.s32 %s46, 1
    %p50 = scmp.eq.s32.totalorder %s12, 1
    %p51 = scmp.ne.s32.totalorder %s46, %s48
    %p52 = scmp.eq.s32.totalorder %s12, 0
    %p53 = por %p51, %p52
    %p54 = scmp.ne.s32.totalorder %s46, %s48
    %p55 = scmp.eq.s32.totalorder %s17, 1
    %p56 = por %p54, %p55
    %p57 = scmp.ne.s32.totalorder %s48, %s49
    %p58 = scmp.eq.s32.totalorder %s17, 0
    %p59 = por %p57, %p58
    %p60 = scmp.ne.s32.totalorder %s48, %s49
    %p61 = scmp.eq.s32.totalorder %s18, 1
    %p62 = por %p60, %p61
    %p64 = scmp.ne.s32.totalorder %s49, %s63
    %p65 = scmp.eq.s32.totalorder %s18, 0
    %p66 = por %p64, %p65
    %s68 = sadd.s32 %s67, 1
    %p71 = scmp.eq.s32.totalorder %s12, 1
    %p72 = scmp.ne.s32.totalorder %s67, %s69
    %p73 = scmp.eq.s32.totalorder %s12, 0
    %p74 = por %p72, %p73
    %p75 = scmp.ne.s32.totalorder %s67, %s69
    %p76 = scmp.eq.s32.totalorder %s17, 1
    %p77 = por %p75, %p76
    %p78 = scmp.ne.s32.totalorder %s69, %s70
    %p79 = scmp.eq.s32.totalorder %s17, 0
    %p80 = por %p78, %p79
    %p81 = scmp.ne.s32.totalorder %s69, %s70
    %p82 = scmp.eq.s32.totalorder %s18, 1
    %p83 = por %p81, %p82
    %p85 = scmp.ne.s32.totalorder %s70, %s84
    %p86 = scmp.eq.s32.totalorder %s18, 0
    %p87 = por %p85, %p86
    %s88 = ssub.s32 %s12, %s19
    %p89 = scmp.eq.s32.totalorder %s88, 0
    %s91 = sadd.s32 %s90, 1
    %s92 = scalar_select %p89, %s90, %s91
    %p95 = pneg %p89
    %p96 = scmp.eq.s32.totalorder %s12, 1
    %p97 = por %p95, %p96
    %p98 = scmp.ne.s32.totalorder %s90, %s93
    %p99 = scmp.eq.s32.totalorder %s12, 0
    %p100 = por %p98, %p99
    %p101 = scmp.ne.s32.totalorder %s90, %s93
    %p102 = scmp.eq.s32.totalorder %s17, 1
    %p103 = por %p101, %p102
    %p104 = scmp.ne.s32.totalorder %s93, %s94
    %p105 = scmp.eq.s32.totalorder %s17, 0
    %p106 = por %p104, %p105
    %p107 = scmp.ne.s32.totalorder %s93, %s94
    %p108 = scmp.eq.s32.totalorder %s18, 1
    %p109 = por %p107, %p108
    %p111 = scmp.ne.s32.totalorder %s94, %s110
    %p112 = scmp.eq.s32.totalorder %s18, 0
    %p113 = por %p111, %p112
    %s115 = sadd.s32 %s114, 1
    %p118 = scmp.eq.s32.totalorder %s12, 1
    %p119 = scmp.ne.s32.totalorder %s114, %s116
    %p120 = scmp.eq.s32.totalorder %s12, 0
    %p121 = por %p119, %p120
    %p122 = scmp.ne.s32.totalorder %s114, %s116
    %p123 = scmp.eq.s32.totalorder %s17, 1
    %p124 = por %p122, %p123
    %p125 = scmp.ne.s32.totalorder %s116, %s117
    %p126 = scmp.eq.s32.totalorder %s17, 0
    %p127 = por %p125, %p126
    %p128 = scmp.ne.s32.totalorder %s116, %s117
    %p129 = scmp.eq.s32.totalorder %s18, 1
    %p130 = por %p128, %p129
    %p132 = scmp.ne.s32.totalorder %s117, %s131
    %p133 = scmp.eq.s32.totalorder %s18, 0
    %p134 = por %p132, %p133
    %s136 = sadd.s32 %s135, 1
    %p139 = scmp.eq.s32.totalorder %s12, 1
    %p140 = scmp.ne.s32.totalorder %s135, %s137
    %p141 = scmp.eq.s32.totalorder %s12, 0
    %p142 = por %p140, %p141
    %p143 = scmp.ne.s32.totalorder %s135, %s137
    %p144 = scmp.eq.s32.totalorder %s17, 1
    %p145 = por %p143, %p144
    %p146 = scmp.ne.s32.totalorder %s137, %s138
    %p147 = scmp.eq.s32.totalorder %s17, 0
    %p148 = por %p146, %p147
    %p149 = scmp.ne.s32.totalorder %s137, %s138
    %p150 = scmp.eq.s32.totalorder %s18, 1
    %p151 = por %p149, %p150
    %p153 = scmp.ne.s32.totalorder %s138, %s152
    %p154 = scmp.eq.s32.totalorder %s18, 0
    %p155 = por %p153, %p154
    %s156 = ssub.s32 %s12, %s19
    %p157 = scmp.eq.s32.totalorder %s156, 0
    %s159 = sadd.s32 %s158, 1
    %s160 = scalar_select %p157, %s158, %s159
    %p163 = pneg %p157
    %p164 = scmp.eq.s32.totalorder %s12, 1
    %p165 = por %p163, %p164
    %p166 = scmp.ne.s32.totalorder %s158, %s161
    %p167 = scmp.eq.s32.totalorder %s12, 0
    %p168 = por %p166, %p167
    %p169 = scmp.ne.s32.totalorder %s158, %s161
    %p170 = scmp.eq.s32.totalorder %s17, 1
    %p171 = por %p169, %p170
    %p172 = scmp.ne.s32.totalorder %s161, %s162
    %p173 = scmp.eq.s32.totalorder %s17, 0
    %p174 = por %p172, %p173
    %p175 = scmp.ne.s32.totalorder %s161, %s162
    %p176 = scmp.eq.s32.totalorder %s18, 1
    %p177 = por %p175, %p176
    %p179 = scmp.ne.s32.totalorder %s162, %s178
    %p180 = scmp.eq.s32.totalorder %s18, 0
    %p181 = por %p179, %p180
    %p182 = scmp.le.s32.totalorder 1, %s12
    %p183 = scmp.lt.s32.totalorder %s12, 3
    %p184 = pnand %p182, %p183
    %p185 = pneg %p184
    // Predicated region
    $region9: #{basic_block_downsample_forward.3} parent=5 // pred_check
      _
    $region10: #{basic_block_downsample_forward.3} parent=5 // pred_check_branch
      %187 = sbr.rel (%p184) target = $region12
    $region11: #{basic_block_downsample_forward.3} parent=5 // pred_region
      %s188 = ssub.s32 %s12, 1
      // Predicated region
      $region13: #{basic_block_downsample_forward.3} parent=11 // pred_check
        %p189 = pneg %p59
      $region14: #{basic_block_downsample_forward.3} parent=11 // pred_check_branch
        %191 = sbr.rel (%p189) target = $region16
      $region15: #{basic_block_downsample_forward.3} parent=11 // pred_region
        _
      $region16: #{basic_block_downsample_forward.3} parent=11 // pred_fallthru
        _
      // Predicated region
      $region17: #{basic_block_downsample_forward.3} parent=11 // pred_check
        %p192 = pneg %p80
      $region18: #{basic_block_downsample_forward.3} parent=11 // pred_check_branch
        %194 = sbr.rel (%p192) target = $region20
      $region19: #{basic_block_downsample_forward.3} parent=11 // pred_region
        _
      $region20: #{basic_block_downsample_forward.3} parent=11 // pred_fallthru
        _
      // Predicated region
      $region21: #{basic_block_downsample_forward.3} parent=11 // pred_check
        %p195 = pneg %p127
      $region22: #{basic_block_downsample_forward.3} parent=11 // pred_check_branch
        %197 = sbr.rel (%p195) target = $region24
      $region23: #{basic_block_downsample_forward.3} parent=11 // pred_region
        _
      $region24: #{basic_block_downsample_forward.3} parent=11 // pred_fallthru
        _
      // Predicated region
      $region25: #{basic_block_downsample_forward.3} parent=11 // pred_check
        %p198 = pneg %p148
      $region26: #{basic_block_downsample_forward.3} parent=11 // pred_check_branch
        %200 = sbr.rel (%p198) target = $region28
      $region27: #{basic_block_downsample_forward.3} parent=11 // pred_region
        _
      $region28: #{basic_block_downsample_forward.3} parent=11 // pred_fallthru
        _
    $region12: #{basic_block_downsample_forward.3} parent=5 // pred_fallthru
      _
    %p201 = scmp.lt.s32.totalorder %s12, 2
    // Predicated region
    $region29: #{basic_block_downsample_forward.3} parent=5 // pred_check
      %p202 = pneg %p201
    $region30: #{basic_block_downsample_forward.3} parent=5 // pred_check_branch
      %204 = sbr.rel (%p202) target = $region32
    $region31: #{basic_block_downsample_forward.3} parent=5 // pred_region
      // Predicated region
      $region33: #{basic_block_downsample_forward.3} parent=31 // pred_check
        %p205 = pneg %p32
      $region34: #{basic_block_downsample_forward.3} parent=31 // pred_check_branch
        %207 = sbr.rel (%p205) target = $region36
      $region35: #{basic_block_downsample_forward.3} parent=31 // pred_region
        %p208 = scmp.lt.s32.totalorder %s12, 1
        %s209 = scalar_select %p208, %s12, 1
        %s210 = smul.addr %s209, 13
        %s211 = smul.addr %s210, 8
        %s212 = scalar_lea.vmem %s0, %s211
      $region36: #{basic_block_downsample_forward.3} parent=31 // pred_fallthru
        _
      // Predicated region
      $region37: #{basic_block_downsample_forward.3} parent=31 // pred_check
        %p213 = pneg %p100
      $region38: #{basic_block_downsample_forward.3} parent=31 // pred_check_branch
        %215 = sbr.rel (%p213) target = $region40
      $region39: #{basic_block_downsample_forward.3} parent=31 // pred_region
        %p216 = scmp.lt.s32.totalorder %s12, 1
        %s217 = scalar_select %p216, %s12, 1
        %s218 = smul.addr %s217, 10
        %s219 = smul.addr %s218, 4
        %s220 = scalar_lea.vmem %s3, %s219
      $region40: #{basic_block_downsample_forward.3} parent=31 // pred_fallthru
        _
    $region32: #{basic_block_downsample_forward.3} parent=5 // pred_fallthru
      _
    %p221 = scmp.le.s32.totalorder 1, %s12
    %p222 = scmp.lt.s32.totalorder %s12, 3
    %p223 = pnand %p221, %p222
    %p224 = pneg %p223
    // Predicated region
    $region41: #{basic_block_downsample_forward.3} parent=5 // pred_check
      _
    $region42: #{basic_block_downsample_forward.3} parent=5 // pred_check_branch
      %226 = sbr.rel (%p223) target = $region44
    $region43: #{basic_block_downsample_forward.3} parent=5 // pred_region
      %s227 = ssub.s32 %s12, 1
      %p228 = scmp.lt.s32.totalorder %s17, 1
      %s229 = scalar_select %p228, %s17, 1
      %s230 = smul.addr %s229, 13
      %s231 = smul.addr %s230, 8
      %s232 = scalar_lea.vmem %s0, %s231
      %p233 = pneg %p38
      %p234 = pneg %p35
      %p235 = pneg %p59
      %p236 = pneg %p56
      %p237 = pneg %p80
      %p238 = pneg %p77
      %p239 = scmp.lt.s32.totalorder %s17, 1
      %s240 = scalar_select %p239, %s17, 1
      %s241 = smul.addr %s240, 10
      %s242 = smul.addr %s241, 4
      %s243 = scalar_lea.vmem %s3, %s242
      %p244 = pneg %p106
      %p245 = pneg %p103
      %p246 = pneg %p127
      %p247 = pneg %p124
      %p248 = pneg %p148
      %p249 = pneg %p145
      %p250 = pneg %p174
      %p251 = pneg %p171
      %p252 = scmp.lt.s32.totalorder %s17, 1
      %s253 = scalar_select %p252, %s17, 1
      %s254 = smul.addr %s253, 10
      %s255 = smul.addr %s254, 8
      %s256 = scalar_lea.vmem %s6, %s255
      %p257 = scmp.lt.s32.totalorder %s17, 1
      %s258 = scalar_select %p257, %s17, 1
      %s259 = smul.addr %s258, 13
      %s260 = smul.addr %s259, 8
      %s261 = scalar_lea.vmem %s0, %s260
      %p262 = scmp.lt.s32.totalorder %s17, 1
      %s263 = scalar_select %p262, %s17, 1
      %s264 = smul.addr %s263, 10
      %s265 = smul.addr %s264, 4
      %s266 = scalar_lea.vmem %s3, %s265
      %p267 = scmp.lt.s32.totalorder %s17, 1
      %s268 = scalar_select %p267, %s17, 1
      %s269 = smul.addr %s268, 10
      %s270 = smul.addr %s269, 8
      %s271 = scalar_lea.vmem %s6, %s270
      %v273 = vld [vmem:[%s261] sm:$0xff]
      %v274 = vld [vmem:[%s261 + $0x8] sm:$0xff]
      %v275 = vld [vmem:[%s261 + $0x10] sm:$0xff]
      %v276 = vld [vmem:[%s261 + $0x18] sm:$0xff]
      %v277 = vld [vmem:[%s261 + $0x20] sm:$0xff]
      %v278 = vld [vmem:[%s261 + $0x28] sm:$0xff]
      %v279 = vld [vmem:[%s261 + $0x30] sm:$0xff]
      %v280 = vld [vmem:[%s261 + $0x38] sm:$0xff]
      %v281 = vld [vmem:[%s261 + $0x40] sm:$0xff]
      %v282 = vld [vmem:[%s261 + $0x48] sm:$0xff]
      %v283 = vpack.c.bf16 %v274, %v273
      %v284 = vpack.c.bf16 %v276, %v275
      %v285 = vpack.c.bf16 %v278, %v277
      %v286 = vpack.c.bf16 %v280, %v279
      %v287 = vpack.c.bf16 %v282, %v281
      %v288 = vld [vmem:[%s1] sm:$0xf]
      %v289 = vld [vmem:[%s1 + $0x4] sm:$0xf]
      %v290 = vld [vmem:[%s1 + $0x8] sm:$0xf]
      %v291 = vld [vmem:[%s1 + $0xc] sm:$0xf]
      %v292 = vld [vmem:[%s1 + $0x10] sm:$0xf]
      %v293 = vld [vmem:[%s1 + $0x14] sm:$0xf]
      %v294 = vld [vmem:[%s1 + $0x18] sm:$0xf]
      %v295 = vld [vmem:[%s1 + $0x1c] sm:$0xf]
      %v296 = vld [vmem:[%s1 + $0x20] sm:$0xf]
      %v297 = vld [vmem:[%s1 + $0x24] sm:$0xf]
      %v298 = vld [vmem:[%s1 + $0x28] sm:$0xf]
      %v299 = vld [vmem:[%s1 + $0x2c] sm:$0xf]
      %v300 = vld [vmem:[%s1 + $0x30] sm:$0xf]
      %v301 = vld [vmem:[%s1 + $0x34] sm:$0xf]
      %v302 = vld [vmem:[%s1 + $0x38] sm:$0xf]
      %v303 = vld [vmem:[%s1 + $0x3c] sm:$0xf]
      %v304 = vld [vmem:[%s261 + $0x1] sm:$0xff]
      %v305 = vld [vmem:[%s261 + $0x9] sm:$0xff]
      %v306 = vld [vmem:[%s261 + $0x11] sm:$0xff]
      %v307 = vld [vmem:[%s261 + $0x19] sm:$0xff]
      %v308 = vld [vmem:[%s261 + $0x21] sm:$0xff]
      %v309 = vld [vmem:[%s261 + $0x29] sm:$0xff]
      %v310 = vld [vmem:[%s261 + $0x31] sm:$0xff]
      %v311 = vld [vmem:[%s261 + $0x39] sm:$0xff]
      %v312 = vld [vmem:[%s261 + $0x41] sm:$0xff]
      %v313 = vld [vmem:[%s261 + $0x49] sm:$0xff]
      %v314 = vpack.c.bf16 %v305, %v304
      %v315 = vpack.c.bf16 %v307, %v306
      %v316 = vpack.c.bf16 %v309, %v308
      %v317 = vpack.c.bf16 %v311, %v310
      %v318 = vpack.c.bf16 %v313, %v312
      %s319 = scalar_lea.vmem %s1, 64
      %v320 = vld [vmem:[%s319] sm:$0xf]
      %v321 = vld [vmem:[%s319 + $0x4] sm:$0xf]
      %v322 = vld [vmem:[%s319 + $0x8] sm:$0xf]
      %v323 = vld [vmem:[%s319 + $0xc] sm:$0xf]
      %v324 = vld [vmem:[%s319 + $0x10] sm:$0xf]
      %v325 = vld [vmem:[%s319 + $0x14] sm:$0xf]
      %v326 = vld [vmem:[%s319 + $0x18] sm:$0xf]
      %v327 = vld [vmem:[%s319 + $0x1c] sm:$0xf]
      %v328 = vld [vmem:[%s319 + $0x20] sm:$0xf]
      %v329 = vld [vmem:[%s319 + $0x24] sm:$0xf]
      %v330 = vld [vmem:[%s319 + $0x28] sm:$0xf]
      %v331 = vld [vmem:[%s319 + $0x2c] sm:$0xf]
      %v332 = vld [vmem:[%s319 + $0x30] sm:$0xf]
      %v333 = vld [vmem:[%s319 + $0x34] sm:$0xf]
      %v334 = vld [vmem:[%s319 + $0x38] sm:$0xf]
      %v335 = vld [vmem:[%s319 + $0x3c] sm:$0xf]
      %v352 = vunpack.c.l.b16 %v320
      %v353 = vunpack.c.l.b16 %v321
      %v354 = vunpack.c.l.b16 %v322
      %v355 = vunpack.c.l.b16 %v323
      %v356 = vunpack.c.l.b16 %v324
      %v357 = vunpack.c.l.b16 %v325
      %v358 = vunpack.c.l.b16 %v326
      %v359 = vunpack.c.l.b16 %v327
      %v360 = vunpack.c.l.b16 %v328
      %v361 = vunpack.c.l.b16 %v329
      %v362 = vunpack.c.l.b16 %v330
      %v363 = vunpack.c.l.b16 %v331
      %v364 = vunpack.c.l.b16 %v332
      %v365 = vunpack.c.l.b16 %v333
      %v366 = vunpack.c.l.b16 %v334
      %v367 = vunpack.c.l.b16 %v335
      %v368 = vpack.c.b16 %v353, %v352
      %v369 = vpack.c.b16 %v355, %v354
      %v370 = vpack.c.b16 %v357, %v356
      %v371 = vpack.c.b16 %v359, %v358
      %v372 = vpack.c.b16 %v361, %v360
      %v373 = vpack.c.b16 %v363, %v362
      %v374 = vpack.c.b16 %v365, %v364
      %v375 = vpack.c.b16 %v367, %v366
      %384 = vmatprep.subr.bf16.mxu0 0
      %385 = vmatpush1.bf16.msra.mxu0 %v375
      %386 = vmatprep.subr.bf16.mxu0 0
      %387 = vmatpush1.bf16.msra.mxu0 %v374
      %388 = vmatprep.subr.bf16.mxu0 0
      %389 = vmatpush1.bf16.msra.mxu0 %v373
      %390 = vmatprep.subr.bf16.mxu0 0
      %391 = vmatpush1.bf16.msra.mxu0 %v372
      %392 = vmatprep.subr.bf16.mxu0 0
      %393 = vmatpush1.bf16.msra.mxu0 %v371
      %394 = vmatprep.subr.bf16.mxu0 0
      %395 = vmatpush1.bf16.msra.mxu0 %v370
      %396 = vmatprep.subr.bf16.mxu0 0
      %397 = vmatpush1.bf16.msra.mxu0 %v369
      %398 = vmatprep.subr.bf16.mxu0 0
      %399 = vmatpush1.bf16.msra.mxu0 %v368
      %400 = vmatprep.subr.bf16.mxu0 0
      %401 = vmatpush2.bf16.msra.mxu0 0
      %402 = vmatprep.subr.bf16.mxu0 0
      %403 = vmatpush2.bf16.msra.mxu0 0
      %404 = vmatprep.subr.bf16.mxu0 0
      %405 = vmatpush2.bf16.msra.mxu0 0
      %406 = vmatprep.subr.bf16.mxu0 0
      %407 = vmatpush2.bf16.msra.mxu0 0
      %408 = vmatprep.subr.bf16.mxu0 0
      %409 = vmatpush2.bf16.msra.mxu0 0
      %410 = vmatprep.subr.bf16.mxu0 0
      %411 = vmatpush2.bf16.msra.mxu0 0
      %412 = vmatprep.subr.bf16.mxu0 0
      %413 = vmatpush2.bf16.msra.mxu0 0
      %414 = vmatprep.subr.bf16.mxu0 0
      %415 = vmatpush2.bf16.msra.mxu0 0
      %416 = vmatprep.mubr.bf16.mxu0 0
      %417 = vmatmul.mubr.bf16.gmra.mxu0 %v314
      %v418 = vpop.f32.mrf.mxu0
      %v419 = vadd.f32 0.0, %v418
      %v420 = vpop.f32.mrf.mxu0
      %v421 = vpop.f32.mrf.mxu0
      %v422 = vadd.f32 0.0, %v421
      %v423 = vpop.f32.mrf.mxu0
      %424 = vmatprep.mubr.bf16.mxu0 0
      %425 = vmatmul.mubr.bf16.gmra.mxu0 %v315
      %v426 = vpop.f32.mrf.mxu0
      %v427 = vadd.f32 0.0, %v426
      %v428 = vpop.f32.mrf.mxu0
      %v429 = vpop.f32.mrf.mxu0
      %v430 = vadd.f32 0.0, %v429
      %v431 = vpop.f32.mrf.mxu0
      %432 = vmatprep.mubr.bf16.mxu0 0
      %433 = vmatmul.mubr.bf16.gmra.mxu0 %v316
      %v434 = vpop.f32.mrf.mxu0
      %v435 = vadd.f32 0.0, %v434
      %v436 = vpop.f32.mrf.mxu0
      %v437 = vpop.f32.mrf.mxu0
      %v438 = vadd.f32 0.0, %v437
      %v439 = vpop.f32.mrf.mxu0
      %440 = vmatprep.mubr.bf16.mxu0 0
      %441 = vmatmul.mubr.bf16.gmra.mxu0 %v317
      %v442 = vpop.f32.mrf.mxu0
      %v443 = vadd.f32 0.0, %v442
      %v444 = vpop.f32.mrf.mxu0
      %v445 = vpop.f32.mrf.mxu0
      %v446 = vadd.f32 0.0, %v445
      %v447 = vpop.f32.mrf.mxu0
      %448 = vmatprep.mubr.bf16.mxu0 0
      %449 = vmatmul.mubr.bf16.gmra.mxu0 %v318
      %v450 = vpop.f32.mrf.mxu0
      %v451 = vadd.f32 0.0, %v450
      %v452 = vpop.f32.mrf.mxu0
      %v453 = vpop.f32.mrf.mxu0
      %v454 = vadd.f32 0.0, %v453
      %v455 = vpop.f32.mrf.mxu0
      %456 = vdwg.mxu0
      %v473 = vunpack.c.l.b16 %v288
      %v474 = vunpack.c.l.b16 %v289
      %v475 = vunpack.c.l.b16 %v290
      %v476 = vunpack.c.l.b16 %v291
      %v477 = vunpack.c.l.b16 %v292
      %v478 = vunpack.c.l.b16 %v293
      %v479 = vunpack.c.l.b16 %v294
      %v480 = vunpack.c.l.b16 %v295
      %v481 = vunpack.c.l.b16 %v296
      %v482 = vunpack.c.l.b16 %v297
      %v483 = vunpack.c.l.b16 %v298
      %v484 = vunpack.c.l.b16 %v299
      %v485 = vunpack.c.l.b16 %v300
      %v486 = vunpack.c.l.b16 %v301
      %v487 = vunpack.c.l.b16 %v302
      %v488 = vunpack.c.l.b16 %v303
      %v489 = vpack.c.b16 %v474, %v473
      %v490 = vpack.c.b16 %v476, %v475
      %v491 = vpack.c.b16 %v478, %v477
      %v492 = vpack.c.b16 %v480, %v479
      %v493 = vpack.c.b16 %v482, %v481
      %v494 = vpack.c.b16 %v484, %v483
      %v495 = vpack.c.b16 %v486, %v485
      %v496 = vpack.c.b16 %v488, %v487
      %505 = vmatprep.subr.bf16.mxu0 0
      %506 = vmatpush1.bf16.msra.mxu0 %v496
      %507 = vmatprep.subr.bf16.mxu0 0
      %508 = vmatpush1.bf16.msra.mxu0 %v495
      %509 = vmatprep.subr.bf16.mxu0 0
      %510 = vmatpush1.bf16.msra.mxu0 %v494
      %511 = vmatprep.subr.bf16.mxu0 0
      %512 = vmatpush1.bf16.msra.mxu0 %v493
      %513 = vmatprep.subr.bf16.mxu0 0
      %514 = vmatpush1.bf16.msra.mxu0 %v492
      %515 = vmatprep.subr.bf16.mxu0 0
      %516 = vmatpush1.bf16.msra.mxu0 %v491
      %517 = vmatprep.subr.bf16.mxu0 0
      %518 = vmatpush1.bf16.msra.mxu0 %v490
      %519 = vmatprep.subr.bf16.mxu0 0
      %520 = vmatpush1.bf16.msra.mxu0 %v489
      %521 = vmatprep.subr.bf16.mxu0 0
      %522 = vmatpush2.bf16.msra.mxu0 0
      %523 = vmatprep.subr.bf16.mxu0 0
      %524 = vmatpush2.bf16.msra.mxu0 0
      %525 = vmatprep.subr.bf16.mxu0 0
      %526 = vmatpush2.bf16.msra.mxu0 0
      %527 = vmatprep.subr.bf16.mxu0 0
      %528 = vmatpush2.bf16.msra.mxu0 0
      %529 = vmatprep.subr.bf16.mxu0 0
      %530 = vmatpush2.bf16.msra.mxu0 0
      %531 = vmatprep.subr.bf16.mxu0 0
      %532 = vmatpush2.bf16.msra.mxu0 0
      %533 = vmatprep.subr.bf16.mxu0 0
      %534 = vmatpush2.bf16.msra.mxu0 0
      %535 = vmatprep.subr.bf16.mxu0 0
      %536 = vmatpush2.bf16.msra.mxu0 0
      %537 = vmatprep.mubr.bf16.mxu0 0
      %538 = vmatmul.mubr.bf16.gmra.mxu0 %v283
      %v539 = vpop.f32.mrf.mxu0
      %v540 = vadd.f32 %v419, %v539
      %v541 = vpop.f32.mrf.mxu0
      %v542 = vpop.f32.mrf.mxu0
      %v543 = vadd.f32 %v422, %v542
      %v544 = vpop.f32.mrf.mxu0
      %545 = vmatprep.mubr.bf16.mxu0 0
      %546 = vmatmul.mubr.bf16.gmra.mxu0 %v284
      %v547 = vpop.f32.mrf.mxu0
      %v548 = vadd.f32 %v427, %v547
      %v549 = vpop.f32.mrf.mxu0
      %v550 = vpop.f32.mrf.mxu0
      %v551 = vadd.f32 %v430, %v550
      %v552 = vpop.f32.mrf.mxu0
      %553 = vmatprep.mubr.bf16.mxu0 0
      %554 = vmatmul.mubr.bf16.gmra.mxu0 %v285
      %v555 = vpop.f32.mrf.mxu0
      %v556 = vadd.f32 %v435, %v555
      %v557 = vpop.f32.mrf.mxu0
      %v558 = vpop.f32.mrf.mxu0
      %v559 = vadd.f32 %v438, %v558
      %v560 = vpop.f32.mrf.mxu0
      %561 = vmatprep.mubr.bf16.mxu0 0
      %562 = vmatmul.mubr.bf16.gmra.mxu0 %v286
      %v563 = vpop.f32.mrf.mxu0
      %v564 = vadd.f32 %v443, %v563
      %v565 = vpop.f32.mrf.mxu0
      %v566 = vpop.f32.mrf.mxu0
      %v567 = vadd.f32 %v446, %v566
      %v568 = vpop.f32.mrf.mxu0
      %569 = vmatprep.mubr.bf16.mxu0 0
      %570 = vmatmul.mubr.bf16.gmra.mxu0 %v287
      %v571 = vpop.f32.mrf.mxu0
      %v572 = vadd.f32 %v451, %v571
      %v573 = vpop.f32.mrf.mxu0
      %v574 = vpop.f32.mrf.mxu0
      %v575 = vadd.f32 %v454, %v574
      %v576 = vpop.f32.mrf.mxu0
      %577 = vdwg.mxu0
      %v578 = vld [vmem:[%s261 + $0x2] sm:$0xff]
      %v579 = vld [vmem:[%s261 + $0xa] sm:$0xff]
      %v580 = vld [vmem:[%s261 + $0x12] sm:$0xff]
      %v581 = vld [vmem:[%s261 + $0x1a] sm:$0xff]
      %v582 = vld [vmem:[%s261 + $0x22] sm:$0xff]
      %v583 = vld [vmem:[%s261 + $0x2a] sm:$0xff]
      %v584 = vld [vmem:[%s261 + $0x32] sm:$0xff]
      %v585 = vld [vmem:[%s261 + $0x3a] sm:$0xff]
      %v586 = vld [vmem:[%s261 + $0x42] sm:$0xff]
      %v587 = vld [vmem:[%s261 + $0x4a] sm:$0xff]
      %v588 = vpack.c.bf16 %v579, %v578
      %v589 = vpack.c.bf16 %v581, %v580
      %v590 = vpack.c.bf16 %v583, %v582
      %v591 = vpack.c.bf16 %v585, %v584
      %v592 = vpack.c.bf16 %v587, %v586
      %s593 = scalar_lea.vmem %s1, 128
      %v594 = vld [vmem:[%s593] sm:$0xf]
      %v595 = vld [vmem:[%s593 + $0x4] sm:$0xf]
      %v596 = vld [vmem:[%s593 + $0x8] sm:$0xf]
      %v597 = vld [vmem:[%s593 + $0xc] sm:$0xf]
      %v598 = vld [vmem:[%s593 + $0x10] sm:$0xf]
      %v599 = vld [vmem:[%s593 + $0x14] sm:$0xf]
      %v600 = vld [vmem:[%s593 + $0x18] sm:$0xf]
      %v601 = vld [vmem:[%s593 + $0x1c] sm:$0xf]
      %v602 = vld [vmem:[%s593 + $0x20] sm:$0xf]
      %v603 = vld [vmem:[%s593 + $0x24] sm:$0xf]
      %v604 = vld [vmem:[%s593 + $0x28] sm:$0xf]
      %v605 = vld [vmem:[%s593 + $0x2c] sm:$0xf]
      %v606 = vld [vmem:[%s593 + $0x30] sm:$0xf]
      %v607 = vld [vmem:[%s593 + $0x34] sm:$0xf]
      %v608 = vld [vmem:[%s593 + $0x38] sm:$0xf]
      %v609 = vld [vmem:[%s593 + $0x3c] sm:$0xf]
      %v626 = vunpack.c.l.b16 %v594
      %v627 = vunpack.c.l.b16 %v595
      %v628 = vunpack.c.l.b16 %v596
      %v629 = vunpack.c.l.b16 %v597
      %v630 = vunpack.c.l.b16 %v598
      %v631 = vunpack.c.l.b16 %v599
      %v632 = vunpack.c.l.b16 %v600
      %v633 = vunpack.c.l.b16 %v601
      %v634 = vunpack.c.l.b16 %v602
      %v635 = vunpack.c.l.b16 %v603
      %v636 = vunpack.c.l.b16 %v604
      %v637 = vunpack.c.l.b16 %v605
      %v638 = vunpack.c.l.b16 %v606
      %v639 = vunpack.c.l.b16 %v607
      %v640 = vunpack.c.l.b16 %v608
      %v641 = vunpack.c.l.b16 %v609
      %v642 = vpack.c.b16 %v627, %v626
      %v643 = vpack.c.b16 %v629, %v628
      %v644 = vpack.c.b16 %v631, %v630
      %v645 = vpack.c.b16 %v633, %v632
      %v646 = vpack.c.b16 %v635, %v634
      %v647 = vpack.c.b16 %v637, %v636
      %v648 = vpack.c.b16 %v639, %v638
      %v649 = vpack.c.b16 %v641, %v640
      %658 = vmatprep.subr.bf16.mxu0 0
      %659 = vmatpush1.bf16.msra.mxu0 %v649
      %660 = vmatprep.subr.bf16.mxu0 0
      %661 = vmatpush1.bf16.msra.mxu0 %v648
      %662 = vmatprep.subr.bf16.mxu0 0
      %663 = vmatpush1.bf16.msra.mxu0 %v647
      %664 = vmatprep.subr.bf16.mxu0 0
      %665 = vmatpush1.bf16.msra.mxu0 %v646
      %666 = vmatprep.subr.bf16.mxu0 0
      %667 = vmatpush1.bf16.msra.mxu0 %v645
      %668 = vmatprep.subr.bf16.mxu0 0
      %669 = vmatpush1.bf16.msra.mxu0 %v644
      %670 = vmatprep.subr.bf16.mxu0 0
      %671 = vmatpush1.bf16.msra.mxu0 %v643
      %672 = vmatprep.subr.bf16.mxu0 0
      %673 = vmatpush1.bf16.msra.mxu0 %v642
      %674 = vmatprep.subr.bf16.mxu0 0
      %675 = vmatpush2.bf16.msra.mxu0 0
      %676 = vmatprep.subr.bf16.mxu0 0
      %677 = vmatpush2.bf16.msra.mxu0 0
      %678 = vmatprep.subr.bf16.mxu0 0
      %679 = vmatpush2.bf16.msra.mxu0 0
      %680 = vmatprep.subr.bf16.mxu0 0
      %681 = vmatpush2.bf16.msra.mxu0 0
      %682 = vmatprep.subr.bf16.mxu0 0
      %683 = vmatpush2.bf16.msra.mxu0 0
      %684 = vmatprep.subr.bf16.mxu0 0
      %685 = vmatpush2.bf16.msra.mxu0 0
      %686 = vmatprep.subr.bf16.mxu0 0
      %687 = vmatpush2.bf16.msra.mxu0 0
      %688 = vmatprep.subr.bf16.mxu0 0
      %689 = vmatpush2.bf16.msra.mxu0 0
      %690 = vmatprep.mubr.bf16.mxu0 0
      %691 = vmatmul.mubr.bf16.gmra.mxu0 %v588
      %v692 = vpop.f32.mrf.mxu0
      %v693 = vadd.f32 0.0, %v692
      %v694 = vpop.f32.mrf.mxu0
      %v695 = vpop.f32.mrf.mxu0
      %v696 = vadd.f32 0.0, %v695
      %v697 = vpop.f32.mrf.mxu0
      %698 = vmatprep.mubr.bf16.mxu0 0
      %699 = vmatmul.mubr.bf16.gmra.mxu0 %v589
      %v700 = vpop.f32.mrf.mxu0
      %v701 = vadd.f32 0.0, %v700
      %v702 = vpop.f32.mrf.mxu0
      %v703 = vpop.f32.mrf.mxu0
      %v704 = vadd.f32 0.0, %v703
      %v705 = vpop.f32.mrf.mxu0
      %706 = vmatprep.mubr.bf16.mxu0 0
      %707 = vmatmul.mubr.bf16.gmra.mxu0 %v590
      %v708 = vpop.f32.mrf.mxu0
      %v709 = vadd.f32 0.0, %v708
      %v710 = vpop.f32.mrf.mxu0
      %v711 = vpop.f32.mrf.mxu0
      %v712 = vadd.f32 0.0, %v711
      %v713 = vpop.f32.mrf.mxu0
      %714 = vmatprep.mubr.bf16.mxu0 0
      %715 = vmatmul.mubr.bf16.gmra.mxu0 %v591
      %v716 = vpop.f32.mrf.mxu0
      %v717 = vadd.f32 0.0, %v716
      %v718 = vpop.f32.mrf.mxu0
      %v719 = vpop.f32.mrf.mxu0
      %v720 = vadd.f32 0.0, %v719
      %v721 = vpop.f32.mrf.mxu0
      %722 = vmatprep.mubr.bf16.mxu0 0
      %723 = vmatmul.mubr.bf16.gmra.mxu0 %v592
      %v724 = vpop.f32.mrf.mxu0
      %v725 = vadd.f32 0.0, %v724
      %v726 = vpop.f32.mrf.mxu0
      %v727 = vpop.f32.mrf.mxu0
      %v728 = vadd.f32 0.0, %v727
      %v729 = vpop.f32.mrf.mxu0
      %730 = vdwg.mxu0
      %v731 = vadd.f32 %v540, %v693
      %v732 = vadd.f32 %v543, %v696
      %v733 = vadd.f32 %v548, %v701
      %v734 = vadd.f32 %v551, %v704
      %v735 = vadd.f32 %v556, %v709
      %v736 = vadd.f32 %v559, %v712
      %v737 = vadd.f32 %v564, %v717
      %v738 = vadd.f32 %v567, %v720
      %v739 = vadd.f32 %v572, %v725
      %v740 = vadd.f32 %v575, %v728
      %v741 = vld [vmem:[%s261 + $0xa] sm:$0xff]
      %v742 = vld [vmem:[%s261 + $0x12] sm:$0xff]
      %v743 = vld [vmem:[%s261 + $0x1a] sm:$0xff]
      %v744 = vld [vmem:[%s261 + $0x22] sm:$0xff]
      %v745 = vld [vmem:[%s261 + $0x2a] sm:$0xff]
      %v746 = vld [vmem:[%s261 + $0x32] sm:$0xff]
      %v747 = vld [vmem:[%s261 + $0x3a] sm:$0xff]
      %v748 = vld [vmem:[%s261 + $0x42] sm:$0xff]
      %v749 = vld [vmem:[%s261 + $0x4a] sm:$0xff]
      %v750 = vld [vmem:[%s261 + $0x52] sm:$0xff]
      %v751 = vpack.c.bf16 %v742, %v741
      %v752 = vpack.c.bf16 %v744, %v743
      %v753 = vpack.c.bf16 %v746, %v745
      %v754 = vpack.c.bf16 %v748, %v747
      %v755 = vpack.c.bf16 %v750, %v749
      %s756 = scalar_lea.vmem %s1, 192
      %v757 = vld [vmem:[%s756] sm:$0xf]
      %v758 = vld [vmem:[%s756 + $0x4] sm:$0xf]
      %v759 = vld [vmem:[%s756 + $0x8] sm:$0xf]
      %v760 = vld [vmem:[%s756 + $0xc] sm:$0xf]
      %v761 = vld [vmem:[%s756 + $0x10] sm:$0xf]
      %v762 = vld [vmem:[%s756 + $0x14] sm:$0xf]
      %v763 = vld [vmem:[%s756 + $0x18] sm:$0xf]
      %v764 = vld [vmem:[%s756 + $0x1c] sm:$0xf]
      %v765 = vld [vmem:[%s756 + $0x20] sm:$0xf]
      %v766 = vld [vmem:[%s756 + $0x24] sm:$0xf]
      %v767 = vld [vmem:[%s756 + $0x28] sm:$0xf]
      %v768 = vld [vmem:[%s756 + $0x2c] sm:$0xf]
      %v769 = vld [vmem:[%s756 + $0x30] sm:$0xf]
      %v770 = vld [vmem:[%s756 + $0x34] sm:$0xf]
      %v771 = vld [vmem:[%s756 + $0x38] sm:$0xf]
      %v772 = vld [vmem:[%s756 + $0x3c] sm:$0xf]
      %v789 = vunpack.c.l.b16 %v757
      %v790 = vunpack.c.l.b16 %v758
      %v791 = vunpack.c.l.b16 %v759
      %v792 = vunpack.c.l.b16 %v760
      %v793 = vunpack.c.l.b16 %v761
      %v794 = vunpack.c.l.b16 %v762
      %v795 = vunpack.c.l.b16 %v763
      %v796 = vunpack.c.l.b16 %v764
      %v797 = vunpack.c.l.b16 %v765
      %v798 = vunpack.c.l.b16 %v766
      %v799 = vunpack.c.l.b16 %v767
      %v800 = vunpack.c.l.b16 %v768
      %v801 = vunpack.c.l.b16 %v769
      %v802 = vunpack.c.l.b16 %v770
      %v803 = vunpack.c.l.b16 %v771
      %v804 = vunpack.c.l.b16 %v772
      %v805 = vpack.c.b16 %v790, %v789
      %v806 = vpack.c.b16 %v792, %v791
      %v807 = vpack.c.b16 %v794, %v793
      %v808 = vpack.c.b16 %v796, %v795
      %v809 = vpack.c.b16 %v798, %v797
      %v810 = vpack.c.b16 %v800, %v799
      %v811 = vpack.c.b16 %v802, %v801
      %v812 = vpack.c.b16 %v804, %v803
      %821 = vmatprep.subr.bf16.mxu0 0
      %822 = vmatpush1.bf16.msra.mxu0 %v812
      %823 = vmatprep.subr.bf16.mxu0 0
      %824 = vmatpush1.bf16.msra.mxu0 %v811
      %825 = vmatprep.subr.bf16.mxu0 0
      %826 = vmatpush1.bf16.msra.mxu0 %v810
      %827 = vmatprep.subr.bf16.mxu0 0
      %828 = vmatpush1.bf16.msra.mxu0 %v809
      %829 = vmatprep.subr.bf16.mxu0 0
      %830 = vmatpush1.bf16.msra.mxu0 %v808
      %831 = vmatprep.subr.bf16.mxu0 0
      %832 = vmatpush1.bf16.msra.mxu0 %v807
      %833 = vmatprep.subr.bf16.mxu0 0
      %834 = vmatpush1.bf16.msra.mxu0 %v806
      %835 = vmatprep.subr.bf16.mxu0 0
      %836 = vmatpush1.bf16.msra.mxu0 %v805
      %837 = vmatprep.subr.bf16.mxu0 0
      %838 = vmatpush2.bf16.msra.mxu0 0
      %839 = vmatprep.subr.bf16.mxu0 0
      %840 = vmatpush2.bf16.msra.mxu0 0
      %841 = vmatprep.subr.bf16.mxu0 0
      %842 = vmatpush2.bf16.msra.mxu0 0
      %843 = vmatprep.subr.bf16.mxu0 0
      %844 = vmatpush2.bf16.msra.mxu0 0
      %845 = vmatprep.subr.bf16.mxu0 0
      %846 = vmatpush2.bf16.msra.mxu0 0
      %847 = vmatprep.subr.bf16.mxu0 0
      %848 = vmatpush2.bf16.msra.mxu0 0
      %849 = vmatprep.subr.bf16.mxu0 0
      %850 = vmatpush2.bf16.msra.mxu0 0
      %851 = vmatprep.subr.bf16.mxu0 0
      %852 = vmatpush2.bf16.msra.mxu0 0
      %853 = vmatprep.mubr.bf16.mxu0 0
      %854 = vmatmul.mubr.bf16.gmra.mxu0 %v751
      %v855 = vpop.f32.mrf.mxu0
      %v856 = vadd.f32 0.0, %v855
      %v857 = vpop.f32.mrf.mxu0
      %v858 = vpop.f32.mrf.mxu0
      %v859 = vadd.f32 0.0, %v858
      %v860 = vpop.f32.mrf.mxu0
      %861 = vmatprep.mubr.bf16.mxu0 0
      %862 = vmatmul.mubr.bf16.gmra.mxu0 %v752
      %v863 = vpop.f32.mrf.mxu0
      %v864 = vadd.f32 0.0, %v863
      %v865 = vpop.f32.mrf.mxu0
      %v866 = vpop.f32.mrf.mxu0
      %v867 = vadd.f32 0.0, %v866
      %v868 = vpop.f32.mrf.mxu0
      %869 = vmatprep.mubr.bf16.mxu0 0
      %870 = vmatmul.mubr.bf16.gmra.mxu0 %v753
      %v871 = vpop.f32.mrf.mxu0
      %v872 = vadd.f32 0.0, %v871
      %v873 = vpop.f32.mrf.mxu0
      %v874 = vpop.f32.mrf.mxu0
      %v875 = vadd.f32 0.0, %v874
      %v876 = vpop.f32.mrf.mxu0
      %877 = vmatprep.mubr.bf16.mxu0 0
      %878 = vmatmul.mubr.bf16.gmra.mxu0 %v754
      %v879 = vpop.f32.mrf.mxu0
      %v880 = vadd.f32 0.0, %v879
      %v881 = vpop.f32.mrf.mxu0
      %v882 = vpop.f32.mrf.mxu0
      %v883 = vadd.f32 0.0, %v882
      %v884 = vpop.f32.mrf.mxu0
      %885 = vmatprep.mubr.bf16.mxu0 0
      %886 = vmatmul.mubr.bf16.gmra.mxu0 %v755
      %v887 = vpop.f32.mrf.mxu0
      %v888 = vadd.f32 0.0, %v887
      %v889 = vpop.f32.mrf.mxu0
      %v890 = vpop.f32.mrf.mxu0
      %v891 = vadd.f32 0.0, %v890
      %v892 = vpop.f32.mrf.mxu0
      %893 = vdwg.mxu0
      %v894 = vadd.f32 %v731, %v856
      %v895 = vadd.f32 %v732, %v859
      %v896 = vadd.f32 %v733, %v864
      %v897 = vadd.f32 %v734, %v867
      %v898 = vadd.f32 %v735, %v872
      %v899 = vadd.f32 %v736, %v875
      %v900 = vadd.f32 %v737, %v880
      %v901 = vadd.f32 %v738, %v883
      %v902 = vadd.f32 %v739, %v888
      %v903 = vadd.f32 %v740, %v891
      %v904 = vld [vmem:[%s261 + $0xb] sm:$0xff]
      %v905 = vld [vmem:[%s261 + $0x13] sm:$0xff]
      %v906 = vld [vmem:[%s261 + $0x1b] sm:$0xff]
      %v907 = vld [vmem:[%s261 + $0x23] sm:$0xff]
      %v908 = vld [vmem:[%s261 + $0x2b] sm:$0xff]
      %v909 = vld [vmem:[%s261 + $0x33] sm:$0xff]
      %v910 = vld [vmem:[%s261 + $0x3b] sm:$0xff]
      %v911 = vld [vmem:[%s261 + $0x43] sm:$0xff]
      %v912 = vld [vmem:[%s261 + $0x4b] sm:$0xff]
      %v913 = vld [vmem:[%s261 + $0x53] sm:$0xff]
      %v914 = vpack.c.bf16 %v905, %v904
      %v915 = vpack.c.bf16 %v907, %v906
      %v916 = vpack.c.bf16 %v909, %v908
      %v917 = vpack.c.bf16 %v911, %v910
      %v918 = vpack.c.bf16 %v913, %v912
      %s919 = scalar_lea.vmem %s1, 256
      %v920 = vld [vmem:[%s919] sm:$0xf]
      %v921 = vld [vmem:[%s919 + $0x4] sm:$0xf]
      %v922 = vld [vmem:[%s919 + $0x8] sm:$0xf]
      %v923 = vld [vmem:[%s919 + $0xc] sm:$0xf]
      %v924 = vld [vmem:[%s919 + $0x10] sm:$0xf]
      %v925 = vld [vmem:[%s919 + $0x14] sm:$0xf]
      %v926 = vld [vmem:[%s919 + $0x18] sm:$0xf]
      %v927 = vld [vmem:[%s919 + $0x1c] sm:$0xf]
      %v928 = vld [vmem:[%s919 + $0x20] sm:$0xf]
      %v929 = vld [vmem:[%s919 + $0x24] sm:$0xf]
      %v930 = vld [vmem:[%s919 + $0x28] sm:$0xf]
      %v931 = vld [vmem:[%s919 + $0x2c] sm:$0xf]
      %v932 = vld [vmem:[%s919 + $0x30] sm:$0xf]
      %v933 = vld [vmem:[%s919 + $0x34] sm:$0xf]
      %v934 = vld [vmem:[%s919 + $0x38] sm:$0xf]
      %v935 = vld [vmem:[%s919 + $0x3c] sm:$0xf]
      %v952 = vunpack.c.l.b16 %v920
      %v953 = vunpack.c.l.b16 %v921
      %v954 = vunpack.c.l.b16 %v922
      %v955 = vunpack.c.l.b16 %v923
      %v956 = vunpack.c.l.b16 %v924
      %v957 = vunpack.c.l.b16 %v925
      %v958 = vunpack.c.l.b16 %v926
      %v959 = vunpack.c.l.b16 %v927
      %v960 = vunpack.c.l.b16 %v928
      %v961 = vunpack.c.l.b16 %v929
      %v962 = vunpack.c.l.b16 %v930
      %v963 = vunpack.c.l.b16 %v931
      %v964 = vunpack.c.l.b16 %v932
      %v965 = vunpack.c.l.b16 %v933
      %v966 = vunpack.c.l.b16 %v934
      %v967 = vunpack.c.l.b16 %v935
      %v968 = vpack.c.b16 %v953, %v952
      %v969 = vpack.c.b16 %v955, %v954
      %v970 = vpack.c.b16 %v957, %v956
      %v971 = vpack.c.b16 %v959, %v958
      %v972 = vpack.c.b16 %v961, %v960
      %v973 = vpack.c.b16 %v963, %v962
      %v974 = vpack.c.b16 %v965, %v964
      %v975 = vpack.c.b16 %v967, %v966
      %984 = vmatprep.subr.bf16.mxu0 0
      %985 = vmatpush1.bf16.msra.mxu0 %v975
      %986 = vmatprep.subr.bf16.mxu0 0
      %987 = vmatpush1.bf16.msra.mxu0 %v974
      %988 = vmatprep.subr.bf16.mxu0 0
      %989 = vmatpush1.bf16.msra.mxu0 %v973
      %990 = vmatprep.subr.bf16.mxu0 0
      %991 = vmatpush1.bf16.msra.mxu0 %v972
      %992 = vmatprep.subr.bf16.mxu0 0
      %993 = vmatpush1.bf16.msra.mxu0 %v971
      %994 = vmatprep.subr.bf16.mxu0 0
      %995 = vmatpush1.bf16.msra.mxu0 %v970
      %996 = vmatprep.subr.bf16.mxu0 0
      %997 = vmatpush1.bf16.msra.mxu0 %v969
      %998 = vmatprep.subr.bf16.mxu0 0
      %999 = vmatpush1.bf16.msra.mxu0 %v968
      %1000 = vmatprep.subr.bf16.mxu0 0
      %1001 = vmatpush2.bf16.msra.mxu0 0
      %1002 = vmatprep.subr.bf16.mxu0 0
      %1003 = vmatpush2.bf16.msra.mxu0 0
      %1004 = vmatprep.subr.bf16.mxu0 0
      %1005 = vmatpush2.bf16.msra.mxu0 0
      %1006 = vmatprep.subr.bf16.mxu0 0
      %1007 = vmatpush2.bf16.msra.mxu0 0
      %1008 = vmatprep.subr.bf16.mxu0 0
      %1009 = vmatpush2.bf16.msra.mxu0 0
      %1010 = vmatprep.subr.bf16.mxu0 0
      %1011 = vmatpush2.bf16.msra.mxu0 0
      %1012 = vmatprep.subr.bf16.mxu0 0
      %1013 = vmatpush2.bf16.msra.mxu0 0
      %1014 = vmatprep.subr.bf16.mxu0 0
      %1015 = vmatpush2.bf16.msra.mxu0 0
      %1016 = vmatprep.mubr.bf16.mxu0 0
      %1017 = vmatmul.mubr.bf16.gmra.mxu0 %v914
      %v1018 = vpop.f32.mrf.mxu0
      %v1019 = vadd.f32 0.0, %v1018
      %v1020 = vpop.f32.mrf.mxu0
      %v1021 = vpop.f32.mrf.mxu0
      %v1022 = vadd.f32 0.0, %v1021
      %v1023 = vpop.f32.mrf.mxu0
      %1024 = vmatprep.mubr.bf16.mxu0 0
      %1025 = vmatmul.mubr.bf16.gmra.mxu0 %v915
      %v1026 = vpop.f32.mrf.mxu0
      %v1027 = vadd.f32 0.0, %v1026
      %v1028 = vpop.f32.mrf.mxu0
      %v1029 = vpop.f32.mrf.mxu0
      %v1030 = vadd.f32 0.0, %v1029
      %v1031 = vpop.f32.mrf.mxu0
      %1032 = vmatprep.mubr.bf16.mxu0 0
      %1033 = vmatmul.mubr.bf16.gmra.mxu0 %v916
      %v1034 = vpop.f32.mrf.mxu0
      %v1035 = vadd.f32 0.0, %v1034
      %v1036 = vpop.f32.mrf.mxu0
      %v1037 = vpop.f32.mrf.mxu0
      %v1038 = vadd.f32 0.0, %v1037
      %v1039 = vpop.f32.mrf.mxu0
      %1040 = vmatprep.mubr.bf16.mxu0 0
      %1041 = vmatmul.mubr.bf16.gmra.mxu0 %v917
      %v1042 = vpop.f32.mrf.mxu0
      %v1043 = vadd.f32 0.0, %v1042
      %v1044 = vpop.f32.mrf.mxu0
      %v1045 = vpop.f32.mrf.mxu0
      %v1046 = vadd.f32 0.0, %v1045
      %v1047 = vpop.f32.mrf.mxu0
      %1048 = vmatprep.mubr.bf16.mxu0 0
      %1049 = vmatmul.mubr.bf16.gmra.mxu0 %v918
      %v1050 = vpop.f32.mrf.mxu0
      %v1051 = vadd.f32 0.0, %v1050
      %v1052 = vpop.f32.mrf.mxu0
      %v1053 = vpop.f32.mrf.mxu0
      %v1054 = vadd.f32 0.0, %v1053
      %v1055 = vpop.f32.mrf.mxu0
      %1056 = vdwg.mxu0
      %v1057 = vadd.f32 %v894, %v1019
      %v1058 = vadd.f32 %v895, %v1022
      %v1059 = vadd.f32 %v896, %v1027
      %v1060 = vadd.f32 %v897, %v1030
      %v1061 = vadd.f32 %v898, %v1035
      %v1062 = vadd.f32 %v899, %v1038
      %v1063 = vadd.f32 %v900, %v1043
      %v1064 = vadd.f32 %v901, %v1046
      %v1065 = vadd.f32 %v902, %v1051
      %v1066 = vadd.f32 %v903, %v1054
      %v1067 = vld [vmem:[%s261 + $0xc] sm:$0xff]
      %v1068 = vld [vmem:[%s261 + $0x14] sm:$0xff]
      %v1069 = vld [vmem:[%s261 + $0x1c] sm:$0xff]
      %v1070 = vld [vmem:[%s261 + $0x24] sm:$0xff]
      %v1071 = vld [vmem:[%s261 + $0x2c] sm:$0xff]
      %v1072 = vld [vmem:[%s261 + $0x34] sm:$0xff]
      %v1073 = vld [vmem:[%s261 + $0x3c] sm:$0xff]
      %v1074 = vld [vmem:[%s261 + $0x44] sm:$0xff]
      %v1075 = vld [vmem:[%s261 + $0x4c] sm:$0xff]
      %v1076 = vld [vmem:[%s261 + $0x54] sm:$0xff]
      %v1077 = vpack.c.bf16 %v1068, %v1067
      %v1078 = vpack.c.bf16 %v1070, %v1069
      %v1079 = vpack.c.bf16 %v1072, %v1071
      %v1080 = vpack.c.bf16 %v1074, %v1073
      %v1081 = vpack.c.bf16 %v1076, %v1075
      %s1082 = scalar_lea.vmem %s1, 320
      %v1083 = vld [vmem:[%s1082] sm:$0xf]
      %v1084 = vld [vmem:[%s1082 + $0x4] sm:$0xf]
      %v1085 = vld [vmem:[%s1082 + $0x8] sm:$0xf]
      %v1086 = vld [vmem:[%s1082 + $0xc] sm:$0xf]
      %v1087 = vld [vmem:[%s1082 + $0x10] sm:$0xf]
      %v1088 = vld [vmem:[%s1082 + $0x14] sm:$0xf]
      %v1089 = vld [vmem:[%s1082 + $0x18] sm:$0xf]
      %v1090 = vld [vmem:[%s1082 + $0x1c] sm:$0xf]
      %v1091 = vld [vmem:[%s1082 + $0x20] sm:$0xf]
      %v1092 = vld [vmem:[%s1082 + $0x24] sm:$0xf]
      %v1093 = vld [vmem:[%s1082 + $0x28] sm:$0xf]
      %v1094 = vld [vmem:[%s1082 + $0x2c] sm:$0xf]
      %v1095 = vld [vmem:[%s1082 + $0x30] sm:$0xf]
      %v1096 = vld [vmem:[%s1082 + $0x34] sm:$0xf]
      %v1097 = vld [vmem:[%s1082 + $0x38] sm:$0xf]
      %v1098 = vld [vmem:[%s1082 + $0x3c] sm:$0xf]
      %v1115 = vunpack.c.l.b16 %v1083
      %v1116 = vunpack.c.l.b16 %v1084
      %v1117 = vunpack.c.l.b16 %v1085
      %v1118 = vunpack.c.l.b16 %v1086
      %v1119 = vunpack.c.l.b16 %v1087
      %v1120 = vunpack.c.l.b16 %v1088
      %v1121 = vunpack.c.l.b16 %v1089
      %v1122 = vunpack.c.l.b16 %v1090
      %v1123 = vunpack.c.l.b16 %v1091
      %v1124 = vunpack.c.l.b16 %v1092
      %v1125 = vunpack.c.l.b16 %v1093
      %v1126 = vunpack.c.l.b16 %v1094
      %v1127 = vunpack.c.l.b16 %v1095
      %v1128 = vunpack.c.l.b16 %v1096
      %v1129 = vunpack.c.l.b16 %v1097
      %v1130 = vunpack.c.l.b16 %v1098
      %v1131 = vpack.c.b16 %v1116, %v1115
      %v1132 = vpack.c.b16 %v1118, %v1117
      %v1133 = vpack.c.b16 %v1120, %v1119
      %v1134 = vpack.c.b16 %v1122, %v1121
      %v1135 = vpack.c.b16 %v1124, %v1123
      %v1136 = vpack.c.b16 %v1126, %v1125
      %v1137 = vpack.c.b16 %v1128, %v1127
      %v1138 = vpack.c.b16 %v1130, %v1129
      %1147 = vmatprep.subr.bf16.mxu0 0
      %1148 = vmatpush1.bf16.msra.mxu0 %v1138
      %1149 = vmatprep.subr.bf16.mxu0 0
      %1150 = vmatpush1.bf16.msra.mxu0 %v1137
      %1151 = vmatprep.subr.bf16.mxu0 0
      %1152 = vmatpush1.bf16.msra.mxu0 %v1136
      %1153 = vmatprep.subr.bf16.mxu0 0
      %1154 = vmatpush1.bf16.msra.mxu0 %v1135
      %1155 = vmatprep.subr.bf16.mxu0 0
      %1156 = vmatpush1.bf16.msra.mxu0 %v1134
      %1157 = vmatprep.subr.bf16.mxu0 0
      %1158 = vmatpush1.bf16.msra.mxu0 %v1133
      %1159 = vmatprep.subr.bf16.mxu0 0
      %1160 = vmatpush1.bf16.msra.mxu0 %v1132
      %1161 = vmatprep.subr.bf16.mxu0 0
      %1162 = vmatpush1.bf16.msra.mxu0 %v1131
      %1163 = vmatprep.subr.bf16.mxu0 0
      %1164 = vmatpush2.bf16.msra.mxu0 0
      %1165 = vmatprep.subr.bf16.mxu0 0
      %1166 = vmatpush2.bf16.msra.mxu0 0
      %1167 = vmatprep.subr.bf16.mxu0 0
      %1168 = vmatpush2.bf16.msra.mxu0 0
      %1169 = vmatprep.subr.bf16.mxu0 0
      %1170 = vmatpush2.bf16.msra.mxu0 0
      %1171 = vmatprep.subr.bf16.mxu0 0
      %1172 = vmatpush2.bf16.msra.mxu0 0
      %1173 = vmatprep.subr.bf16.mxu0 0
      %1174 = vmatpush2.bf16.msra.mxu0 0
      %1175 = vmatprep.subr.bf16.mxu0 0
      %1176 = vmatpush2.bf16.msra.mxu0 0
      %1177 = vmatprep.subr.bf16.mxu0 0
      %1178 = vmatpush2.bf16.msra.mxu0 0
      %1179 = vmatprep.mubr.bf16.mxu0 0
      %1180 = vmatmul.mubr.bf16.gmra.mxu0 %v1077
      %v1181 = vpop.f32.mrf.mxu0
      %v1182 = vadd.f32 0.0, %v1181
      %v1183 = vpop.f32.mrf.mxu0
      %v1184 = vpop.f32.mrf.mxu0
      %v1185 = vadd.f32 0.0, %v1184
      %v1186 = vpop.f32.mrf.mxu0
      %1187 = vmatprep.mubr.bf16.mxu0 0
      %1188 = vmatmul.mubr.bf16.gmra.mxu0 %v1078
      %v1189 = vpop.f32.mrf.mxu0
      %v1190 = vadd.f32 0.0, %v1189
      %v1191 = vpop.f32.mrf.mxu0
      %v1192 = vpop.f32.mrf.mxu0
      %v1193 = vadd.f32 0.0, %v1192
      %v1194 = vpop.f32.mrf.mxu0
      %1195 = vmatprep.mubr.bf16.mxu0 0
      %1196 = vmatmul.mubr.bf16.gmra.mxu0 %v1079
      %v1197 = vpop.f32.mrf.mxu0
      %v1198 = vadd.f32 0.0, %v1197
      %v1199 = vpop.f32.mrf.mxu0
      %v1200 = vpop.f32.mrf.mxu0
      %v1201 = vadd.f32 0.0, %v1200
      %v1202 = vpop.f32.mrf.mxu0
      %1203 = vmatprep.mubr.bf16.mxu0 0
      %1204 = vmatmul.mubr.bf16.gmra.mxu0 %v1080
      %v1205 = vpop.f32.mrf.mxu0
      %v1206 = vadd.f32 0.0, %v1205
      %v1207 = vpop.f32.mrf.mxu0
      %v1208 = vpop.f32.mrf.mxu0
      %v1209 = vadd.f32 0.0, %v1208
      %v1210 = vpop.f32.mrf.mxu0
      %1211 = vmatprep.mubr.bf16.mxu0 0
      %1212 = vmatmul.mubr.bf16.gmra.mxu0 %v1081
      %v1213 = vpop.f32.mrf.mxu0
      %v1214 = vadd.f32 0.0, %v1213
      %v1215 = vpop.f32.mrf.mxu0
      %v1216 = vpop.f32.mrf.mxu0
      %v1217 = vadd.f32 0.0, %v1216
      %v1218 = vpop.f32.mrf.mxu0
      %1219 = vdwg.mxu0
      %v1220 = vadd.f32 %v1057, %v1182
      %v1221 = vadd.f32 %v1058, %v1185
      %v1222 = vadd.f32 %v1059, %v1190
      %v1223 = vadd.f32 %v1060, %v1193
      %v1224 = vadd.f32 %v1061, %v1198
      %v1225 = vadd.f32 %v1062, %v1201
      %v1226 = vadd.f32 %v1063, %v1206
      %v1227 = vadd.f32 %v1064, %v1209
      %v1228 = vadd.f32 %v1065, %v1214
      %v1229 = vadd.f32 %v1066, %v1217
      %v1230 = vld [vmem:[%s261 + $0x14] sm:$0xff]
      %v1231 = vld [vmem:[%s261 + $0x1c] sm:$0xff]
      %v1232 = vld [vmem:[%s261 + $0x24] sm:$0xff]
      %v1233 = vld [vmem:[%s261 + $0x2c] sm:$0xff]
      %v1234 = vld [vmem:[%s261 + $0x34] sm:$0xff]
      %v1235 = vld [vmem:[%s261 + $0x3c] sm:$0xff]
      %v1236 = vld [vmem:[%s261 + $0x44] sm:$0xff]
      %v1237 = vld [vmem:[%s261 + $0x4c] sm:$0xff]
      %v1238 = vld [vmem:[%s261 + $0x54] sm:$0xff]
      %v1239 = vld [vmem:[%s261 + $0x5c] sm:$0xff]
      %v1240 = vpack.c.bf16 %v1231, %v1230
      %v1241 = vpack.c.bf16 %v1233, %v1232
      %v1242 = vpack.c.bf16 %v1235, %v1234
      %v1243 = vpack.c.bf16 %v1237, %v1236
      %v1244 = vpack.c.bf16 %v1239, %v1238
      %s1245 = scalar_lea.vmem %s1, 384
      %v1246 = vld [vmem:[%s1245] sm:$0xf]
      %v1247 = vld [vmem:[%s1245 + $0x4] sm:$0xf]
      %v1248 = vld [vmem:[%s1245 + $0x8] sm:$0xf]
      %v1249 = vld [vmem:[%s1245 + $0xc] sm:$0xf]
      %v1250 = vld [vmem:[%s1245 + $0x10] sm:$0xf]
      %v1251 = vld [vmem:[%s1245 + $0x14] sm:$0xf]
      %v1252 = vld [vmem:[%s1245 + $0x18] sm:$0xf]
      %v1253 = vld [vmem:[%s1245 + $0x1c] sm:$0xf]
      %v1254 = vld [vmem:[%s1245 + $0x20] sm:$0xf]
      %v1255 = vld [vmem:[%s1245 + $0x24] sm:$0xf]
      %v1256 = vld [vmem:[%s1245 + $0x28] sm:$0xf]
      %v1257 = vld [vmem:[%s1245 + $0x2c] sm:$0xf]
      %v1258 = vld [vmem:[%s1245 + $0x30] sm:$0xf]
      %v1259 = vld [vmem:[%s1245 + $0x34] sm:$0xf]
      %v1260 = vld [vmem:[%s1245 + $0x38] sm:$0xf]
      %v1261 = vld [vmem:[%s1245 + $0x3c] sm:$0xf]
      %v1278 = vunpack.c.l.b16 %v1246
      %v1279 = vunpack.c.l.b16 %v1247
      %v1280 = vunpack.c.l.b16 %v1248
      %v1281 = vunpack.c.l.b16 %v1249
      %v1282 = vunpack.c.l.b16 %v1250
      %v1283 = vunpack.c.l.b16 %v1251
      %v1284 = vunpack.c.l.b16 %v1252
      %v1285 = vunpack.c.l.b16 %v1253
      %v1286 = vunpack.c.l.b16 %v1254
      %v1287 = vunpack.c.l.b16 %v1255
      %v1288 = vunpack.c.l.b16 %v1256
      %v1289 = vunpack.c.l.b16 %v1257
      %v1290 = vunpack.c.l.b16 %v1258
      %v1291 = vunpack.c.l.b16 %v1259
      %v1292 = vunpack.c.l.b16 %v1260
      %v1293 = vunpack.c.l.b16 %v1261
      %v1294 = vpack.c.b16 %v1279, %v1278
      %v1295 = vpack.c.b16 %v1281, %v1280
      %v1296 = vpack.c.b16 %v1283, %v1282
      %v1297 = vpack.c.b16 %v1285, %v1284
      %v1298 = vpack.c.b16 %v1287, %v1286
      %v1299 = vpack.c.b16 %v1289, %v1288
      %v1300 = vpack.c.b16 %v1291, %v1290
      %v1301 = vpack.c.b16 %v1293, %v1292
      %1310 = vmatprep.subr.bf16.mxu0 0
      %1311 = vmatpush1.bf16.msra.mxu0 %v1301
      %1312 = vmatprep.subr.bf16.mxu0 0
      %1313 = vmatpush1.bf16.msra.mxu0 %v1300
      %1314 = vmatprep.subr.bf16.mxu0 0
      %1315 = vmatpush1.bf16.msra.mxu0 %v1299
      %1316 = vmatprep.subr.bf16.mxu0 0
      %1317 = vmatpush1.bf16.msra.mxu0 %v1298
      %1318 = vmatprep.subr.bf16.mxu0 0
      %1319 = vmatpush1.bf16.msra.mxu0 %v1297
      %1320 = vmatprep.subr.bf16.mxu0 0
      %1321 = vmatpush1.bf16.msra.mxu0 %v1296
      %1322 = vmatprep.subr.bf16.mxu0 0
      %1323 = vmatpush1.bf16.msra.mxu0 %v1295
      %1324 = vmatprep.subr.bf16.mxu0 0
      %1325 = vmatpush1.bf16.msra.mxu0 %v1294
      %1326 = vmatprep.subr.bf16.mxu0 0
      %1327 = vmatpush2.bf16.msra.mxu0 0
      %1328 = vmatprep.subr.bf16.mxu0 0
      %1329 = vmatpush2.bf16.msra.mxu0 0
      %1330 = vmatprep.subr.bf16.mxu0 0
      %1331 = vmatpush2.bf16.msra.mxu0 0
      %1332 = vmatprep.subr.bf16.mxu0 0
      %1333 = vmatpush2.bf16.msra.mxu0 0
      %1334 = vmatprep.subr.bf16.mxu0 0
      %1335 = vmatpush2.bf16.msra.mxu0 0
      %1336 = vmatprep.subr.bf16.mxu0 0
      %1337 = vmatpush2.bf16.msra.mxu0 0
      %1338 = vmatprep.subr.bf16.mxu0 0
      %1339 = vmatpush2.bf16.msra.mxu0 0
      %1340 = vmatprep.subr.bf16.mxu0 0
      %1341 = vmatpush2.bf16.msra.mxu0 0
      %1342 = vmatprep.mubr.bf16.mxu0 0
      %1343 = vmatmul.mubr.bf16.gmra.mxu0 %v1240
      %v1344 = vpop.f32.mrf.mxu0
      %v1345 = vadd.f32 0.0, %v1344
      %v1346 = vpop.f32.mrf.mxu0
      %v1347 = vpop.f32.mrf.mxu0
      %v1348 = vadd.f32 0.0, %v1347
      %v1349 = vpop.f32.mrf.mxu0
      %1350 = vmatprep.mubr.bf16.mxu0 0
      %1351 = vmatmul.mubr.bf16.gmra.mxu0 %v1241
      %v1352 = vpop.f32.mrf.mxu0
      %v1353 = vadd.f32 0.0, %v1352
      %v1354 = vpop.f32.mrf.mxu0
      %v1355 = vpop.f32.mrf.mxu0
      %v1356 = vadd.f32 0.0, %v1355
      %v1357 = vpop.f32.mrf.mxu0
      %1358 = vmatprep.mubr.bf16.mxu0 0
      %1359 = vmatmul.mubr.bf16.gmra.mxu0 %v1242
      %v1360 = vpop.f32.mrf.mxu0
      %v1361 = vadd.f32 0.0, %v1360
      %v1362 = vpop.f32.mrf.mxu0
      %v1363 = vpop.f32.mrf.mxu0
      %v1364 = vadd.f32 0.0, %v1363
      %v1365 = vpop.f32.mrf.mxu0
      %1366 = vmatprep.mubr.bf16.mxu0 0
      %1367 = vmatmul.mubr.bf16.gmra.mxu0 %v1243
      %v1368 = vpop.f32.mrf.mxu0
      %v1369 = vadd.f32 0.0, %v1368
      %v1370 = vpop.f32.mrf.mxu0
      %v1371 = vpop.f32.mrf.mxu0
      %v1372 = vadd.f32 0.0, %v1371
      %v1373 = vpop.f32.mrf.mxu0
      %1374 = vmatprep.mubr.bf16.mxu0 0
      %1375 = vmatmul.mubr.bf16.gmra.mxu0 %v1244
      %v1376 = vpop.f32.mrf.mxu0
      %v1377 = vadd.f32 0.0, %v1376
      %v1378 = vpop.f32.mrf.mxu0
      %v1379 = vpop.f32.mrf.mxu0
      %v1380 = vadd.f32 0.0, %v1379
      %v1381 = vpop.f32.mrf.mxu0
      %1382 = vdwg.mxu0
      %v1383 = vadd.f32 %v1220, %v1345
      %v1384 = vadd.f32 %v1221, %v1348
      %v1385 = vadd.f32 %v1222, %v1353
      %v1386 = vadd.f32 %v1223, %v1356
      %v1387 = vadd.f32 %v1224, %v1361
      %v1388 = vadd.f32 %v1225, %v1364
      %v1389 = vadd.f32 %v1226, %v1369
      %v1390 = vadd.f32 %v1227, %v1372
      %v1391 = vadd.f32 %v1228, %v1377
      %v1392 = vadd.f32 %v1229, %v1380
      %v1393 = vld [vmem:[%s261 + $0x15] sm:$0xff]
      %v1394 = vld [vmem:[%s261 + $0x1d] sm:$0xff]
      %v1395 = vld [vmem:[%s261 + $0x25] sm:$0xff]
      %v1396 = vld [vmem:[%s261 + $0x2d] sm:$0xff]
      %v1397 = vld [vmem:[%s261 + $0x35] sm:$0xff]
      %v1398 = vld [vmem:[%s261 + $0x3d] sm:$0xff]
      %v1399 = vld [vmem:[%s261 + $0x45] sm:$0xff]
      %v1400 = vld [vmem:[%s261 + $0x4d] sm:$0xff]
      %v1401 = vld [vmem:[%s261 + $0x55] sm:$0xff]
      %v1402 = vld [vmem:[%s261 + $0x5d] sm:$0xff]
      %v1403 = vpack.c.bf16 %v1394, %v1393
      %v1404 = vpack.c.bf16 %v1396, %v1395
      %v1405 = vpack.c.bf16 %v1398, %v1397
      %v1406 = vpack.c.bf16 %v1400, %v1399
      %v1407 = vpack.c.bf16 %v1402, %v1401
      %s1408 = scalar_lea.vmem %s1, 448
      %v1409 = vld [vmem:[%s1408] sm:$0xf]
      %v1410 = vld [vmem:[%s1408 + $0x4] sm:$0xf]
      %v1411 = vld [vmem:[%s1408 + $0x8] sm:$0xf]
      %v1412 = vld [vmem:[%s1408 + $0xc] sm:$0xf]
      %v1413 = vld [vmem:[%s1408 + $0x10] sm:$0xf]
      %v1414 = vld [vmem:[%s1408 + $0x14] sm:$0xf]
      %v1415 = vld [vmem:[%s1408 + $0x18] sm:$0xf]
      %v1416 = vld [vmem:[%s1408 + $0x1c] sm:$0xf]
      %v1417 = vld [vmem:[%s1408 + $0x20] sm:$0xf]
      %v1418 = vld [vmem:[%s1408 + $0x24] sm:$0xf]
      %v1419 = vld [vmem:[%s1408 + $0x28] sm:$0xf]
      %v1420 = vld [vmem:[%s1408 + $0x2c] sm:$0xf]
      %v1421 = vld [vmem:[%s1408 + $0x30] sm:$0xf]
      %v1422 = vld [vmem:[%s1408 + $0x34] sm:$0xf]
      %v1423 = vld [vmem:[%s1408 + $0x38] sm:$0xf]
      %v1424 = vld [vmem:[%s1408 + $0x3c] sm:$0xf]
      %v1441 = vunpack.c.l.b16 %v1409
      %v1442 = vunpack.c.l.b16 %v1410
      %v1443 = vunpack.c.l.b16 %v1411
      %v1444 = vunpack.c.l.b16 %v1412
      %v1445 = vunpack.c.l.b16 %v1413
      %v1446 = vunpack.c.l.b16 %v1414
      %v1447 = vunpack.c.l.b16 %v1415
      %v1448 = vunpack.c.l.b16 %v1416
      %v1449 = vunpack.c.l.b16 %v1417
      %v1450 = vunpack.c.l.b16 %v1418
      %v1451 = vunpack.c.l.b16 %v1419
      %v1452 = vunpack.c.l.b16 %v1420
      %v1453 = vunpack.c.l.b16 %v1421
      %v1454 = vunpack.c.l.b16 %v1422
      %v1455 = vunpack.c.l.b16 %v1423
      %v1456 = vunpack.c.l.b16 %v1424
      %v1457 = vpack.c.b16 %v1442, %v1441
      %v1458 = vpack.c.b16 %v1444, %v1443
      %v1459 = vpack.c.b16 %v1446, %v1445
      %v1460 = vpack.c.b16 %v1448, %v1447
      %v1461 = vpack.c.b16 %v1450, %v1449
      %v1462 = vpack.c.b16 %v1452, %v1451
      %v1463 = vpack.c.b16 %v1454, %v1453
      %v1464 = vpack.c.b16 %v1456, %v1455
      %1473 = vmatprep.subr.bf16.mxu0 0
      %1474 = vmatpush1.bf16.msra.mxu0 %v1464
      %1475 = vmatprep.subr.bf16.mxu0 0
      %1476 = vmatpush1.bf16.msra.mxu0 %v1463
      %1477 = vmatprep.subr.bf16.mxu0 0
      %1478 = vmatpush1.bf16.msra.mxu0 %v1462
      %1479 = vmatprep.subr.bf16.mxu0 0
      %1480 = vmatpush1.bf16.msra.mxu0 %v1461
      %1481 = vmatprep.subr.bf16.mxu0 0
      %1482 = vmatpush1.bf16.msra.mxu0 %v1460
      %1483 = vmatprep.subr.bf16.mxu0 0
      %1484 = vmatpush1.bf16.msra.mxu0 %v1459
      %1485 = vmatprep.subr.bf16.mxu0 0
      %1486 = vmatpush1.bf16.msra.mxu0 %v1458
      %1487 = vmatprep.subr.bf16.mxu0 0
      %1488 = vmatpush1.bf16.msra.mxu0 %v1457
      %1489 = vmatprep.subr.bf16.mxu0 0
      %1490 = vmatpush2.bf16.msra.mxu0 0
      %1491 = vmatprep.subr.bf16.mxu0 0
      %1492 = vmatpush2.bf16.msra.mxu0 0
      %1493 = vmatprep.subr.bf16.mxu0 0
      %1494 = vmatpush2.bf16.msra.mxu0 0
      %1495 = vmatprep.subr.bf16.mxu0 0
      %1496 = vmatpush2.bf16.msra.mxu0 0
      %1497 = vmatprep.subr.bf16.mxu0 0
      %1498 = vmatpush2.bf16.msra.mxu0 0
      %1499 = vmatprep.subr.bf16.mxu0 0
      %1500 = vmatpush2.bf16.msra.mxu0 0
      %1501 = vmatprep.subr.bf16.mxu0 0
      %1502 = vmatpush2.bf16.msra.mxu0 0
      %1503 = vmatprep.subr.bf16.mxu0 0
      %1504 = vmatpush2.bf16.msra.mxu0 0
      %1505 = vmatprep.mubr.bf16.mxu0 0
      %1506 = vmatmul.mubr.bf16.gmra.mxu0 %v1403
      %v1507 = vpop.f32.mrf.mxu0
      %v1508 = vadd.f32 0.0, %v1507
      %v1509 = vpop.f32.mrf.mxu0
      %v1510 = vpop.f32.mrf.mxu0
      %v1511 = vadd.f32 0.0, %v1510
      %v1512 = vpop.f32.mrf.mxu0
      %1513 = vmatprep.mubr.bf16.mxu0 0
      %1514 = vmatmul.mubr.bf16.gmra.mxu0 %v1404
      %v1515 = vpop.f32.mrf.mxu0
      %v1516 = vadd.f32 0.0, %v1515
      %v1517 = vpop.f32.mrf.mxu0
      %v1518 = vpop.f32.mrf.mxu0
      %v1519 = vadd.f32 0.0, %v1518
      %v1520 = vpop.f32.mrf.mxu0
      %1521 = vmatprep.mubr.bf16.mxu0 0
      %1522 = vmatmul.mubr.bf16.gmra.mxu0 %v1405
      %v1523 = vpop.f32.mrf.mxu0
      %v1524 = vadd.f32 0.0, %v1523
      %v1525 = vpop.f32.mrf.mxu0
      %v1526 = vpop.f32.mrf.mxu0
      %v1527 = vadd.f32 0.0, %v1526
      %v1528 = vpop.f32.mrf.mxu0
      %1529 = vmatprep.mubr.bf16.mxu0 0
      %1530 = vmatmul.mubr.bf16.gmra.mxu0 %v1406
      %v1531 = vpop.f32.mrf.mxu0
      %v1532 = vadd.f32 0.0, %v1531
      %v1533 = vpop.f32.mrf.mxu0
      %v1534 = vpop.f32.mrf.mxu0
      %v1535 = vadd.f32 0.0, %v1534
      %v1536 = vpop.f32.mrf.mxu0
      %1537 = vmatprep.mubr.bf16.mxu0 0
      %1538 = vmatmul.mubr.bf16.gmra.mxu0 %v1407
      %v1539 = vpop.f32.mrf.mxu0
      %v1540 = vadd.f32 0.0, %v1539
      %v1541 = vpop.f32.mrf.mxu0
      %v1542 = vpop.f32.mrf.mxu0
      %v1543 = vadd.f32 0.0, %v1542
      %v1544 = vpop.f32.mrf.mxu0
      %1545 = vdwg.mxu0
      %v1546 = vadd.f32 %v1383, %v1508
      %v1547 = vadd.f32 %v1384, %v1511
      %v1548 = vadd.f32 %v1385, %v1516
      %v1549 = vadd.f32 %v1386, %v1519
      %v1550 = vadd.f32 %v1387, %v1524
      %v1551 = vadd.f32 %v1388, %v1527
      %v1552 = vadd.f32 %v1389, %v1532
      %v1553 = vadd.f32 %v1390, %v1535
      %v1554 = vadd.f32 %v1391, %v1540
      %v1555 = vadd.f32 %v1392, %v1543
      %v1556 = vld [vmem:[%s261 + $0x16] sm:$0xff]
      %v1557 = vld [vmem:[%s261 + $0x1e] sm:$0xff]
      %v1558 = vld [vmem:[%s261 + $0x26] sm:$0xff]
      %v1559 = vld [vmem:[%s261 + $0x2e] sm:$0xff]
      %v1560 = vld [vmem:[%s261 + $0x36] sm:$0xff]
      %v1561 = vld [vmem:[%s261 + $0x3e] sm:$0xff]
      %v1562 = vld [vmem:[%s261 + $0x46] sm:$0xff]
      %v1563 = vld [vmem:[%s261 + $0x4e] sm:$0xff]
      %v1564 = vld [vmem:[%s261 + $0x56] sm:$0xff]
      %v1565 = vld [vmem:[%s261 + $0x5e] sm:$0xff]
      %v1566 = vpack.c.bf16 %v1557, %v1556
      %v1567 = vpack.c.bf16 %v1559, %v1558
      %v1568 = vpack.c.bf16 %v1561, %v1560
      %v1569 = vpack.c.bf16 %v1563, %v1562
      %v1570 = vpack.c.bf16 %v1565, %v1564
      %s1571 = scalar_lea.vmem %s1, 512
      %v1572 = vld [vmem:[%s1571] sm:$0xf]
      %v1573 = vld [vmem:[%s1571 + $0x4] sm:$0xf]
      %v1574 = vld [vmem:[%s1571 + $0x8] sm:$0xf]
      %v1575 = vld [vmem:[%s1571 + $0xc] sm:$0xf]
      %v1576 = vld [vmem:[%s1571 + $0x10] sm:$0xf]
      %v1577 = vld [vmem:[%s1571 + $0x14] sm:$0xf]
      %v1578 = vld [vmem:[%s1571 + $0x18] sm:$0xf]
      %v1579 = vld [vmem:[%s1571 + $0x1c] sm:$0xf]
      %v1580 = vld [vmem:[%s1571 + $0x20] sm:$0xf]
      %v1581 = vld [vmem:[%s1571 + $0x24] sm:$0xf]
      %v1582 = vld [vmem:[%s1571 + $0x28] sm:$0xf]
      %v1583 = vld [vmem:[%s1571 + $0x2c] sm:$0xf]
      %v1584 = vld [vmem:[%s1571 + $0x30] sm:$0xf]
      %v1585 = vld [vmem:[%s1571 + $0x34] sm:$0xf]
      %v1586 = vld [vmem:[%s1571 + $0x38] sm:$0xf]
      %v1587 = vld [vmem:[%s1571 + $0x3c] sm:$0xf]
      %v1604 = vunpack.c.l.b16 %v1572
      %v1605 = vunpack.c.l.b16 %v1573
      %v1606 = vunpack.c.l.b16 %v1574
      %v1607 = vunpack.c.l.b16 %v1575
      %v1608 = vunpack.c.l.b16 %v1576
      %v1609 = vunpack.c.l.b16 %v1577
      %v1610 = vunpack.c.l.b16 %v1578
      %v1611 = vunpack.c.l.b16 %v1579
      %v1612 = vunpack.c.l.b16 %v1580
      %v1613 = vunpack.c.l.b16 %v1581
      %v1614 = vunpack.c.l.b16 %v1582
      %v1615 = vunpack.c.l.b16 %v1583
      %v1616 = vunpack.c.l.b16 %v1584
      %v1617 = vunpack.c.l.b16 %v1585
      %v1618 = vunpack.c.l.b16 %v1586
      %v1619 = vunpack.c.l.b16 %v1587
      %v1620 = vpack.c.b16 %v1605, %v1604
      %v1621 = vpack.c.b16 %v1607, %v1606
      %v1622 = vpack.c.b16 %v1609, %v1608
      %v1623 = vpack.c.b16 %v1611, %v1610
      %v1624 = vpack.c.b16 %v1613, %v1612
      %v1625 = vpack.c.b16 %v1615, %v1614
      %v1626 = vpack.c.b16 %v1617, %v1616
      %v1627 = vpack.c.b16 %v1619, %v1618
      %1636 = vmatprep.subr.bf16.mxu0 0
      %1637 = vmatpush1.bf16.msra.mxu0 %v1627
      %1638 = vmatprep.subr.bf16.mxu0 0
      %1639 = vmatpush1.bf16.msra.mxu0 %v1626
      %1640 = vmatprep.subr.bf16.mxu0 0
      %1641 = vmatpush1.bf16.msra.mxu0 %v1625
      %1642 = vmatprep.subr.bf16.mxu0 0
      %1643 = vmatpush1.bf16.msra.mxu0 %v1624
      %1644 = vmatprep.subr.bf16.mxu0 0
      %1645 = vmatpush1.bf16.msra.mxu0 %v1623
      %1646 = vmatprep.subr.bf16.mxu0 0
      %1647 = vmatpush1.bf16.msra.mxu0 %v1622
      %1648 = vmatprep.subr.bf16.mxu0 0
      %1649 = vmatpush1.bf16.msra.mxu0 %v1621
      %1650 = vmatprep.subr.bf16.mxu0 0
      %1651 = vmatpush1.bf16.msra.mxu0 %v1620
      %1652 = vmatprep.subr.bf16.mxu0 0
      %1653 = vmatpush2.bf16.msra.mxu0 0
      %1654 = vmatprep.subr.bf16.mxu0 0
      %1655 = vmatpush2.bf16.msra.mxu0 0
      %1656 = vmatprep.subr.bf16.mxu0 0
      %1657 = vmatpush2.bf16.msra.mxu0 0
      %1658 = vmatprep.subr.bf16.mxu0 0
      %1659 = vmatpush2.bf16.msra.mxu0 0
      %1660 = vmatprep.subr.bf16.mxu0 0
      %1661 = vmatpush2.bf16.msra.mxu0 0
      %1662 = vmatprep.subr.bf16.mxu0 0
      %1663 = vmatpush2.bf16.msra.mxu0 0
      %1664 = vmatprep.subr.bf16.mxu0 0
      %1665 = vmatpush2.bf16.msra.mxu0 0
      %1666 = vmatprep.subr.bf16.mxu0 0
      %1667 = vmatpush2.bf16.msra.mxu0 0
      %1668 = vmatprep.mubr.bf16.mxu0 0
      %1669 = vmatmul.mubr.bf16.gmra.mxu0 %v1566
      %v1670 = vpop.f32.mrf.mxu0
      %v1671 = vadd.f32 0.0, %v1670
      %v1672 = vpop.f32.mrf.mxu0
      %v1673 = vpop.f32.mrf.mxu0
      %v1674 = vadd.f32 0.0, %v1673
      %v1675 = vpop.f32.mrf.mxu0
      %1676 = vmatprep.mubr.bf16.mxu0 0
      %1677 = vmatmul.mubr.bf16.gmra.mxu0 %v1567
      %v1678 = vpop.f32.mrf.mxu0
      %v1679 = vadd.f32 0.0, %v1678
      %v1680 = vpop.f32.mrf.mxu0
      %v1681 = vpop.f32.mrf.mxu0
      %v1682 = vadd.f32 0.0, %v1681
      %v1683 = vpop.f32.mrf.mxu0
      %1684 = vmatprep.mubr.bf16.mxu0 0
      %1685 = vmatmul.mubr.bf16.gmra.mxu0 %v1568
      %v1686 = vpop.f32.mrf.mxu0
      %v1687 = vadd.f32 0.0, %v1686
      %v1688 = vpop.f32.mrf.mxu0
      %v1689 = vpop.f32.mrf.mxu0
      %v1690 = vadd.f32 0.0, %v1689
      %v1691 = vpop.f32.mrf.mxu0
      %1692 = vmatprep.mubr.bf16.mxu0 0
      %1693 = vmatmul.mubr.bf16.gmra.mxu0 %v1569
      %v1694 = vpop.f32.mrf.mxu0
      %v1695 = vadd.f32 0.0, %v1694
      %v1696 = vpop.f32.mrf.mxu0
      %v1697 = vpop.f32.mrf.mxu0
      %v1698 = vadd.f32 0.0, %v1697
      %v1699 = vpop.f32.mrf.mxu0
      %1700 = vmatprep.mubr.bf16.mxu0 0
      %1701 = vmatmul.mubr.bf16.gmra.mxu0 %v1570
      %v1702 = vpop.f32.mrf.mxu0
      %v1703 = vadd.f32 0.0, %v1702
      %v1704 = vpop.f32.mrf.mxu0
      %v1705 = vpop.f32.mrf.mxu0
      %v1706 = vadd.f32 0.0, %v1705
      %v1707 = vpop.f32.mrf.mxu0
      %1708 = vdwg.mxu0
      %v1709 = vadd.f32 %v1546, %v1671
      %v1710 = vadd.f32 %v1547, %v1674
      %v1711 = vadd.f32 %v1548, %v1679
      %v1712 = vadd.f32 %v1549, %v1682
      %v1713 = vadd.f32 %v1550, %v1687
      %v1714 = vadd.f32 %v1551, %v1690
      %v1715 = vadd.f32 %v1552, %v1695
      %v1716 = vadd.f32 %v1553, %v1698
      %v1717 = vadd.f32 %v1554, %v1703
      %v1718 = vadd.f32 %v1555, %v1706
      %v1719 = vld [vmem:[%s2] sm:$0x1]
      %v1721 = vlaneseq
      %v1722 = vshrl.u32 %v1721, 7
      %v1723 = vsub.s32 0, %v1722
      %v1724 = vrot.slane %v1719, %v1723
      %v1726 = vadd.f32 %v1709, %v1724
      %v1727 = vadd.f32 %v1710, %v1724
      %v1728 = vadd.f32 %v1711, %v1724
      %v1729 = vadd.f32 %v1712, %v1724
      %v1730 = vadd.f32 %v1713, %v1724
      %v1731 = vadd.f32 %v1714, %v1724
      %v1732 = vadd.f32 %v1715, %v1724
      %v1733 = vadd.f32 %v1716, %v1724
      %v1734 = vadd.f32 %v1717, %v1724
      %v1735 = vadd.f32 %v1718, %v1724
      %v1736 = vld [vmem:[%s266] sm:$0xf]
      %v1737 = vld [vmem:[%s266 + $0x4] sm:$0xf]
      %v1738 = vld [vmem:[%s266 + $0x8] sm:$0xf]
      %v1739 = vld [vmem:[%s266 + $0xc] sm:$0xf]
      %v1740 = vld [vmem:[%s266 + $0x10] sm:$0xf]
      %v1741 = vld [vmem:[%s266 + $0x14] sm:$0xf]
      %v1742 = vld [vmem:[%s266 + $0x18] sm:$0xf]
      %v1743 = vld [vmem:[%s266 + $0x1c] sm:$0xf]
      %v1744 = vld [vmem:[%s266 + $0x20] sm:$0xf]
      %v1745 = vld [vmem:[%s266 + $0x24] sm:$0xf]
      %v1746 = vld [vmem:[%s4] sm:$0xf]
      %v1747 = vld [vmem:[%s4 + $0x4] sm:$0xf]
      %v1748 = vld [vmem:[%s4 + $0x8] sm:$0xf]
      %v1749 = vld [vmem:[%s4 + $0xc] sm:$0xf]
      %v1750 = vld [vmem:[%s4 + $0x10] sm:$0xf]
      %v1751 = vld [vmem:[%s4 + $0x14] sm:$0xf]
      %v1752 = vld [vmem:[%s4 + $0x18] sm:$0xf]
      %v1753 = vld [vmem:[%s4 + $0x1c] sm:$0xf]
      %v1754 = vld [vmem:[%s4 + $0x20] sm:$0xf]
      %v1755 = vld [vmem:[%s4 + $0x24] sm:$0xf]
      %v1756 = vld [vmem:[%s4 + $0x28] sm:$0xf]
      %v1757 = vld [vmem:[%s4 + $0x2c] sm:$0xf]
      %v1758 = vld [vmem:[%s4 + $0x30] sm:$0xf]
      %v1759 = vld [vmem:[%s4 + $0x34] sm:$0xf]
      %v1760 = vld [vmem:[%s4 + $0x38] sm:$0xf]
      %v1761 = vld [vmem:[%s4 + $0x3c] sm:$0xf]
      %v1772 = vunpack.c.l.b16 %v1736
      %v1773 = vunpack.c.l.b16 %v1737
      %v1774 = vunpack.c.l.b16 %v1738
      %v1775 = vunpack.c.l.b16 %v1739
      %v1776 = vunpack.c.l.b16 %v1740
      %v1777 = vunpack.c.l.b16 %v1741
      %v1778 = vunpack.c.l.b16 %v1742
      %v1779 = vunpack.c.l.b16 %v1743
      %v1780 = vunpack.c.l.b16 %v1744
      %v1781 = vunpack.c.l.b16 %v1745
      %v1782 = vpack.c.b16 %v1773, %v1772
      %v1783 = vpack.c.b16 %v1775, %v1774
      %v1784 = vpack.c.b16 %v1777, %v1776
      %v1785 = vpack.c.b16 %v1779, %v1778
      %v1786 = vpack.c.b16 %v1781, %v1780
      %v1808 = vunpack.c.l.b16 %v1746
      %v1809 = vunpack.c.l.b16 %v1747
      %v1810 = vunpack.c.l.b16 %v1748
      %v1811 = vunpack.c.l.b16 %v1749
      %v1812 = vunpack.c.l.b16 %v1750
      %v1813 = vunpack.c.l.b16 %v1751
      %v1814 = vunpack.c.l.b16 %v1752
      %v1815 = vunpack.c.l.b16 %v1753
      %v1816 = vunpack.c.l.b16 %v1754
      %v1817 = vunpack.c.l.b16 %v1755
      %v1818 = vunpack.c.l.b16 %v1756
      %v1819 = vunpack.c.l.b16 %v1757
      %v1820 = vunpack.c.l.b16 %v1758
      %v1821 = vunpack.c.l.b16 %v1759
      %v1822 = vunpack.c.l.b16 %v1760
      %v1823 = vunpack.c.l.b16 %v1761
      %v1824 = vpack.c.b16 %v1809, %v1808
      %v1825 = vpack.c.b16 %v1811, %v1810
      %v1826 = vpack.c.b16 %v1813, %v1812
      %v1827 = vpack.c.b16 %v1815, %v1814
      %v1828 = vpack.c.b16 %v1817, %v1816
      %v1829 = vpack.c.b16 %v1819, %v1818
      %v1830 = vpack.c.b16 %v1821, %v1820
      %v1831 = vpack.c.b16 %v1823, %v1822
      %1840 = vmatprep.subr.bf16.mxu0 0
      %1841 = vmatpush1.bf16.msra.mxu0 %v1831
      %1842 = vmatprep.subr.bf16.mxu0 0
      %1843 = vmatpush1.bf16.msra.mxu0 %v1830
      %1844 = vmatprep.subr.bf16.mxu0 0
      %1845 = vmatpush1.bf16.msra.mxu0 %v1829
      %1846 = vmatprep.subr.bf16.mxu0 0
      %1847 = vmatpush1.bf16.msra.mxu0 %v1828
      %1848 = vmatprep.subr.bf16.mxu0 0
      %1849 = vmatpush1.bf16.msra.mxu0 %v1827
      %1850 = vmatprep.subr.bf16.mxu0 0
      %1851 = vmatpush1.bf16.msra.mxu0 %v1826
      %1852 = vmatprep.subr.bf16.mxu0 0
      %1853 = vmatpush1.bf16.msra.mxu0 %v1825
      %1854 = vmatprep.subr.bf16.mxu0 0
      %1855 = vmatpush1.bf16.msra.mxu0 %v1824
      %1856 = vmatprep.subr.bf16.mxu0 0
      %1857 = vmatpush2.bf16.msra.mxu0 0
      %1858 = vmatprep.subr.bf16.mxu0 0
      %1859 = vmatpush2.bf16.msra.mxu0 0
      %1860 = vmatprep.subr.bf16.mxu0 0
      %1861 = vmatpush2.bf16.msra.mxu0 0
      %1862 = vmatprep.subr.bf16.mxu0 0
      %1863 = vmatpush2.bf16.msra.mxu0 0
      %1864 = vmatprep.subr.bf16.mxu0 0
      %1865 = vmatpush2.bf16.msra.mxu0 0
      %1866 = vmatprep.subr.bf16.mxu0 0
      %1867 = vmatpush2.bf16.msra.mxu0 0
      %1868 = vmatprep.subr.bf16.mxu0 0
      %1869 = vmatpush2.bf16.msra.mxu0 0
      %1870 = vmatprep.subr.bf16.mxu0 0
      %1871 = vmatpush2.bf16.msra.mxu0 0
      %1872 = vmatprep.mubr.bf16.mxu0 0
      %1873 = vmatmul.mubr.bf16.gmra.mxu0 %v1782
      %v1874 = vpop.f32.mrf.mxu0
      %v1875 = vadd.f32 0.0, %v1874
      %v1876 = vpop.f32.mrf.mxu0
      %v1877 = vpop.f32.mrf.mxu0
      %v1878 = vadd.f32 0.0, %v1877
      %v1879 = vpop.f32.mrf.mxu0
      %1880 = vmatprep.mubr.bf16.mxu0 0
      %1881 = vmatmul.mubr.bf16.gmra.mxu0 %v1783
      %v1882 = vpop.f32.mrf.mxu0
      %v1883 = vadd.f32 0.0, %v1882
      %v1884 = vpop.f32.mrf.mxu0
      %v1885 = vpop.f32.mrf.mxu0
      %v1886 = vadd.f32 0.0, %v1885
      %v1887 = vpop.f32.mrf.mxu0
      %1888 = vmatprep.mubr.bf16.mxu0 0
      %1889 = vmatmul.mubr.bf16.gmra.mxu0 %v1784
      %v1890 = vpop.f32.mrf.mxu0
      %v1891 = vadd.f32 0.0, %v1890
      %v1892 = vpop.f32.mrf.mxu0
      %v1893 = vpop.f32.mrf.mxu0
      %v1894 = vadd.f32 0.0, %v1893
      %v1895 = vpop.f32.mrf.mxu0
      %1896 = vmatprep.mubr.bf16.mxu0 0
      %1897 = vmatmul.mubr.bf16.gmra.mxu0 %v1785
      %v1898 = vpop.f32.mrf.mxu0
      %v1899 = vadd.f32 0.0, %v1898
      %v1900 = vpop.f32.mrf.mxu0
      %v1901 = vpop.f32.mrf.mxu0
      %v1902 = vadd.f32 0.0, %v1901
      %v1903 = vpop.f32.mrf.mxu0
      %1904 = vmatprep.mubr.bf16.mxu0 0
      %1905 = vmatmul.mubr.bf16.gmra.mxu0 %v1786
      %v1906 = vpop.f32.mrf.mxu0
      %v1907 = vadd.f32 0.0, %v1906
      %v1908 = vpop.f32.mrf.mxu0
      %v1909 = vpop.f32.mrf.mxu0
      %v1910 = vadd.f32 0.0, %v1909
      %v1911 = vpop.f32.mrf.mxu0
      %1912 = vdwg.mxu0
      %v1913 = vadd.f32 %v1726, %v1875
      %v1914 = vadd.f32 %v1727, %v1878
      %v1915 = vadd.f32 %v1728, %v1883
      %v1916 = vadd.f32 %v1729, %v1886
      %v1917 = vadd.f32 %v1730, %v1891
      %v1918 = vadd.f32 %v1731, %v1894
      %v1919 = vadd.f32 %v1732, %v1899
      %v1920 = vadd.f32 %v1733, %v1902
      %v1921 = vadd.f32 %v1734, %v1907
      %v1922 = vadd.f32 %v1735, %v1910
      %v1923 = vld [vmem:[%s5] sm:$0x1]
      %v1925 = vlaneseq
      %v1926 = vshrl.u32 %v1925, 7
      %v1927 = vsub.s32 0, %v1926
      %v1928 = vrot.slane %v1923, %v1927
      %v1930 = vadd.f32 %v1913, %v1928
      %v1931 = vadd.f32 %v1914, %v1928
      %v1932 = vadd.f32 %v1915, %v1928
      %v1933 = vadd.f32 %v1916, %v1928
      %v1934 = vadd.f32 %v1917, %v1928
      %v1935 = vadd.f32 %v1918, %v1928
      %v1936 = vadd.f32 %v1919, %v1928
      %v1937 = vadd.f32 %v1920, %v1928
      %v1938 = vadd.f32 %v1921, %v1928
      %v1939 = vadd.f32 %v1922, %v1928
      %vm1940 = vcmp.gt.f32.partialorder %v1930, 0.0
      %vm1941 = vcmp.gt.f32.partialorder %v1931, 0.0
      %vm1942 = vcmp.gt.f32.partialorder %v1932, 0.0
      %vm1943 = vcmp.gt.f32.partialorder %v1933, 0.0
      %vm1944 = vcmp.gt.f32.partialorder %v1934, 0.0
      %vm1945 = vcmp.gt.f32.partialorder %v1935, 0.0
      %vm1946 = vcmp.gt.f32.partialorder %v1936, 0.0
      %vm1947 = vcmp.gt.f32.partialorder %v1937, 0.0
      %vm1948 = vcmp.gt.f32.partialorder %v1938, 0.0
      %vm1949 = vcmp.gt.f32.partialorder %v1939, 0.0
      %v1950 = vmul.f32 %v1930, 0.05
      %v1951 = vmul.f32 %v1931, 0.05
      %v1952 = vmul.f32 %v1932, 0.05
      %v1953 = vmul.f32 %v1933, 0.05
      %v1954 = vmul.f32 %v1934, 0.05
      %v1955 = vmul.f32 %v1935, 0.05
      %v1956 = vmul.f32 %v1936, 0.05
      %v1957 = vmul.f32 %v1937, 0.05
      %v1958 = vmul.f32 %v1938, 0.05
      %v1959 = vmul.f32 %v1939, 0.05
      %v1960 = vsel %vm1940, %v1930, %v1950
      %v1961 = vsel %vm1941, %v1931, %v1951
      %v1962 = vsel %vm1942, %v1932, %v1952
      %v1963 = vsel %vm1943, %v1933, %v1953
      %v1964 = vsel %vm1944, %v1934, %v1954
      %v1965 = vsel %vm1945, %v1935, %v1955
      %v1966 = vsel %vm1946, %v1936, %v1956
      %v1967 = vsel %vm1947, %v1937, %v1957
      %v1968 = vsel %vm1948, %v1938, %v1958
      %v1969 = vsel %vm1949, %v1939, %v1959
      %1970 = vst [vmem:[%s271] sm:$0xff] %v1960
      %1971 = vst [vmem:[%s271 + $0x8] sm:$0xff] %v1961
      %1972 = vst [vmem:[%s271 + $0x10] sm:$0xff] %v1962
      %1973 = vst [vmem:[%s271 + $0x18] sm:$0xff] %v1963
      %1974 = vst [vmem:[%s271 + $0x20] sm:$0xff] %v1964
      %1975 = vst [vmem:[%s271 + $0x28] sm:$0xff] %v1965
      %1976 = vst [vmem:[%s271 + $0x30] sm:$0xff] %v1966
      %1977 = vst [vmem:[%s271 + $0x38] sm:$0xff] %v1967
      %1978 = vst [vmem:[%s271 + $0x40] sm:$0xff] %v1968
      %1979 = vst [vmem:[%s271 + $0x48] sm:$0xff] %v1969
      %p1980 = scmp.lt.s32.totalorder %s17, 1
      %s1981 = scalar_select %p1980, %s17, 1
      %s1982 = smul.addr %s1981, 10
      %s1983 = smul.addr %s1982, 8
      %s1984 = scalar_lea.vmem %s6, %s1983
      // Predicated region
      $region45: #{basic_block_downsample_forward.3} parent=43 // pred_check
        %p1985 = pneg %p171
      $region46: #{basic_block_downsample_forward.3} parent=43 // pred_check_branch
        %1987 = sbr.rel (%p1985) target = $region48
      $region47: #{basic_block_downsample_forward.3} parent=43 // pred_region
        _
      $region48: #{basic_block_downsample_forward.3} parent=43 // pred_fallthru
        _
    $region44: #{basic_block_downsample_forward.3} parent=5 // pred_fallthru
      _
    %p1988 = scmp.le.s32.totalorder 2, %s12
    // Predicated region
    $region49: #{basic_block_downsample_forward.3} parent=5 // pred_check
      %p1989 = pneg %p1988
    $region50: #{basic_block_downsample_forward.3} parent=5 // pred_check_branch
      %1991 = sbr.rel (%p1989) target = $region52
    $region51: #{basic_block_downsample_forward.3} parent=5 // pred_region
      %s1992 = ssub.s32 %s12, 2
      // Predicated region
      $region53: #{basic_block_downsample_forward.3} parent=51 // pred_check
        %p1993 = pneg %p177
      $region54: #{basic_block_downsample_forward.3} parent=51 // pred_check_branch
        %1995 = sbr.rel (%p1993) target = $region56
      $region55: #{basic_block_downsample_forward.3} parent=51 // pred_region
        %p1996 = scmp.lt.s32.totalorder %s18, 1
        %s1997 = scalar_select %p1996, %s18, 1
        %s1998 = smul.addr %s1997, 10
        %s1999 = smul.addr %s1998, 8
        %s2000 = scalar_lea.vmem %s6, %s1999
      $region56: #{basic_block_downsample_forward.3} parent=51 // pred_fallthru
        _
    $region52: #{basic_block_downsample_forward.3} parent=5 // pred_fallthru
      _
  $region6: #{basic_block_downsample_forward.3} parent=0 // loop_footer
    %s16 = sadd.s32 1, %s12
  $region7: #{basic_block_downsample_forward.3} parent=0 // loop_footer_branch
    %11 = sbr.rel target = $region3
  $region8: #{basic_block_downsample_forward.3} parent=0 // loop_exit
    _

</llo_original>
